<compile_context>
chip_gen: v7x
topology: tpu7x:2x2x1
jax: 0.10.0
libtpu: 0.0.40
codegen_flags: <defaults>
</compile_context>

<pallas_src>
import jax
import jax.numpy as jnp
from jax.experimental import pallas as pl
from jax.experimental.pallas import tpu as pltpu

BN_EPS = 1e-5
LANE = 128        # per-encoder lane-padded channel width
CAT = 2 * LANE    # fused [online || target] lane width


# ----------------------------------------------------------------------------
# Fused Pallas kernel: BFS ring mask + both encoders + masked SCE loss
# ----------------------------------------------------------------------------
def make_cg_kernel(layers, depth, ring_width, n_nodes):
    snap = depth - ring_width   # snapshot step for the inner reachability set

    def kernel(a_ref, feat_ref, onehot_ref, token_ref,
               w0_ref, w1_ref, g0_ref, b0_ref, g1_ref, b1_ref,
               loss_ref):
        a = a_ref[...]            # (N, N) bf16 — DMA'd once, reused everywhere
        feat = feat_ref[...]      # (N, 128) f32
        token = token_ref[...]    # (1, 128) f32

        # ---- mask_right: BFS ring mask, MXU prologue -----------------------
        reach = onehot_ref[...]   # (N, 1) f32 one-hot of the central node
        inner = reach if snap == 0 else jnp.zeros_like(reach)
        for d in range(1, depth + 1):
            nbr = jnp.dot(a, reach.astype(jnp.bfloat16),
                          preferred_element_type=jnp.float32)
            reach = jnp.minimum(reach + nbr, 1.0)        # reach | neighbors(reach)
            if d == snap:
                inner = reach
        mask = reach * (1.0 - inner)                     # (N, 1) in {0, 1}

        # ---- masked feature rows (enc_mask_token), built in-kernel ---------
        h_on = feat * (1.0 - mask) + token * mask        # exact 0/1 select
        h = jnp.concatenate([h_on, feat], axis=-1)       # (N, 256) [online || target]

        inv_n = 1.0 / float(n_nodes)

        def bn_relu(z, gamma, beta):
            # Single-pass training-mode BatchNorm1d (stats over nodes) + ReLU.
            # NOTE: divides by the full sublane extent — valid because N is not
            # sublane-padded at this size.
            s1 = jnp.sum(z, axis=0, keepdims=True)
            s2 = jnp.sum(z * z, axis=0, keepdims=True)
            mu = s1 * inv_n
            var = jnp.maximum(s2 * inv_n - mu * mu, 0.0)
            zn = (z - mu) * jax.lax.rsqrt(var + BN_EPS) * gamma + beta
            return jnp.maximum(zn, 0.0)

        # ---- both encoders, fused along the lane axis (block-diag weights) --
        for l in range(layers):   # unrolled; `layers` is a Python constant
            # GINConv(eps=0, sum aggregator): (A + I) @ h == A @ h + h
            agg = jnp.dot(a, h.astype(jnp.bfloat16),
                          preferred_element_type=jnp.float32) + h
            # MLP: Linear(no bias) -> BatchNorm1d -> ReLU -> Linear(no bias)
            z = jnp.dot(agg.astype(jnp.bfloat16), w0_ref[l],
                        preferred_element_type=jnp.float32)
            z = bn_relu(z, g0_ref[l], b0_ref[l])
            z = jnp.dot(z.astype(jnp.bfloat16), w1_ref[l],
                        preferred_element_type=jnp.float32)
            # Encoder1 per-layer BatchNorm(hidden) + ReLU
            h = bn_relu(z, g1_ref[l], b1_ref[l])

        # ---- SCE loss epilogue (alpha = 1) ----------------------------------
        h1 = h[:, :LANE]          # online encoder output
        h2 = h[:, LANE:]          # target encoder output
        # F.normalize(p=2, eps=1e-12) == x * rsqrt(max(sum(x^2), 1e-24))
        inv1 = jax.lax.rsqrt(jnp.maximum(jnp.sum(h1 * h1, axis=-1, keepdims=True), 1e-24))
        inv2 = jax.lax.rsqrt(jnp.maximum(jnp.sum(h2 * h2, axis=-1, keepdims=True), 1e-24))
        cos = jnp.sum(h1 * h2, axis=-1, keepdims=True) * inv1 * inv2       # (N, 1)
        num = jnp.sum((1.0 - cos) * mask, axis=0, keepdims=True)           # (1, 1)
        den = jnp.sum(mask, axis=0, keepdims=True)                         # (1, 1)
        loss_ref[...] = num / jnp.maximum(den, 1.0)   # exact divide

    return kernel


# ----------------------------------------------------------------------------
# Wrapper
# ----------------------------------------------------------------------------
def _pad_cols(x, width=LANE):
    pad = width - x.shape[-1]
    return jnp.pad(x, ((0, 0), (0, pad))) if pad else x


def _block_diag(w_on, w_tg):
    """(CAT, CAT) f32 block-diagonal: online in [0:128)^2, target in [128:256)^2."""
    out = jnp.zeros((CAT, CAT), jnp.float32)
    out = out.at[:w_on.shape[0], :w_on.shape[1]].set(w_on)
    out = out.at[LANE:LANE + w_tg.shape[0], LANE:LANE + w_tg.shape[1]].set(w_tg)
    return out


def _full_spec(shape):
    nd = len(shape)
    return pl.BlockSpec(shape, lambda i, _nd=nd: (0,) * _nd)


def cg_fused(adj_bf16, feat, onehot, token, online_params, target_params,
             depth, ring_width):
    """One pallas_call covering the ring mask, both encoders and the SCE loss."""
    n = adj_bf16.shape[0]
    layers = len(online_params)

    feat_p = _pad_cols(feat)                 # (N, 128) f32
    token_p = _pad_cols(token)               # (1, 128) f32
    onehot_col = onehot.reshape(n, 1)        # (N, 1)   f32

    w0 = jnp.stack([_block_diag(o["w0"], t["w0"])
                    for o, t in zip(online_params, target_params)]).astype(jnp.bfloat16)
    w1 = jnp.stack([_block_diag(o["w1"], t["w1"])
                    for o, t in zip(online_params, target_params)]).astype(jnp.bfloat16)

    def cat_vec(key):   # (L, 1, 256) f32; padded lanes zero keep padding inert
        return jnp.stack([jnp.concatenate([_pad_cols(o[key]), _pad_cols(t[key])], axis=-1)
                          for o, t in zip(online_params, target_params)])

    g0, b0, g1, b1 = (cat_vec(k) for k in ("g0", "b0", "g1", "b1"))

    inputs = (adj_bf16, feat_p, onehot_col, token_p, w0, w1, g0, b0, g1, b1)

    # Advisory cost estimate: BFS matvecs + layers x (A@h + 2 dense matmuls) + loss.
    flops = (depth * 2 * n * n
             + layers * (2 * n * n * CAT + 2 * 2 * n * CAT * CAT)
             + 8 * n * CAT)
    transcendentals = layers * 2 * CAT + 2 * n
    bytes_accessed = sum(int(x.size) * x.dtype.itemsize for x in inputs) + 4

    return pl.pallas_call(
        make_cg_kernel(layers, depth, ring_width, n),
        out_shape=jax.ShapeDtypeStruct((1, 1), jnp.float32),
        grid=(1,),
        in_specs=[_full_spec(x.shape) for x in inputs],
        out_specs=_full_spec((1, 1)),
        compiler_params=pltpu.CompilerParams(dimension_semantics=("arbitrary",)),
        cost_estimate=pl.CostEstimate(flops=int(flops),
                                      transcendentals=int(transcendentals),
                                      bytes_accessed=int(bytes_accessed)),
    )(*inputs)


# ----------------------------------------------------------------------------
# Plain-JAX glue: parameters and CG forward
# ----------------------------------------------------------------------------
def init_encoder_params(key, in_hidden, out_hidden, hidden, layers):
    params = []
    for layer in range(layers):
        d_in = in_hidden if layer == 0 else hidden
        key, k0, k1 = jax.random.split(key, 3)
        params.append(dict(
            w0=0.1 * jax.random.normal(k0, (d_in, out_hidden), jnp.float32),
            w1=0.1 * jax.random.normal(k1, (out_hidden, hidden), jnp.float32),
            g0=jnp.ones((1, out_hidden), jnp.float32),   # MLP BatchNorm1d(out_hidden)
            b0=jnp.zeros((1, out_hidden), jnp.float32),
            g1=jnp.ones((1, hidden), jnp.float32),       # Encoder1 BatchNorm(hidden)
            b1=jnp.zeros((1, hidden), jnp.float32),
        ))
    return params


def cg_forward(adj, feat, params, depth, ring_width, key):
    n = adj.shape[0]
    # mask_right: one random central node (torch.randperm analogue) -> one-hot.
    central = jax.random.permutation(key, n)[0]
    onehot = (jnp.arange(n) == central).astype(jnp.float32)
    # Single bf16 copy of the 0/1 adjacency (exact); the BFS, the GIN
    # aggregations and the masking all run on it inside the kernel.
    adj_bf = adj.astype(jnp.bfloat16)
    loss = cg_fused(adj_bf, feat, onehot, params["enc_mask_token"],
                    params["online"], params["target"], depth, ring_width)
    return loss[0, 0]


# ----------------------------------------------------------------------------
if __name__ == "__main__":
    # Small, deterministic config consistent with CG.__init__
    N = 64            # number of graph nodes
    in_hidden = 8
    out_hidden = 32
    hidden = 32
    layers = 2
    depth = 2
    ring_width = 1

    root = jax.random.PRNGKey(0)
    k_adj, k_feat, k_online, k_target, k_mask = jax.random.split(root, 5)

    # Random undirected graph (dense 0/1 adjacency, no self loops)
    upper = (jax.random.uniform(k_adj, (N, N)) < 0.15).astype(jnp.float32)
    adj = jnp.triu(upper, k=1)
    adj = adj + adj.T

    feat = jax.random.normal(k_feat, (N, in_hidden), jnp.float32)

    params = {
        "online": init_encoder_params(k_online, in_hidden, out_hidden, hidden, layers),
        "target": init_encoder_params(k_target, in_hidden, out_hidden, hidden, layers),
        "enc_mask_token": jnp.zeros((1, in_hidden), jnp.float32),   # nn.Parameter(zeros)
    }

    loss = cg_forward(adj, feat, params, depth, ring_width, k_mask)
    jax.block_until_ready(loss)
    assert jnp.isfinite(loss), "loss is not finite"
    print("KERNEL_OK")
</pallas_src>

<mosaic_0001>
module attributes {stable_mosaic.version = 11 : i64} {
  func.func @kernel(%arg0: i32, %arg1: memref<64x64xbf16, #tpu.memory_space<vmem>>, %arg2: memref<64x128xf32, #tpu.memory_space<vmem>>, %arg3: memref<64x1xf32, #tpu.memory_space<vmem>>, %arg4: memref<1x128xf32, #tpu.memory_space<vmem>>, %arg5: memref<2x256x256xbf16, #tpu.memory_space<vmem>>, %arg6: memref<2x256x256xbf16, #tpu.memory_space<vmem>>, %arg7: memref<2x1x256xf32, #tpu.memory_space<vmem>>, %arg8: memref<2x1x256xf32, #tpu.memory_space<vmem>>, %arg9: memref<2x1x256xf32, #tpu.memory_space<vmem>>, %arg10: memref<2x1x256xf32, #tpu.memory_space<vmem>>, %arg11: memref<1x1xf32, #tpu.memory_space<vmem>>) attributes {dimension_semantics = [#tpu.dimension_semantics<arbitrary>], iteration_bounds = array<i64: 1>, scalar_prefetch = 0 : i64, scratch_operands = 0 : i64, tpu.core_type = #tpu.core_type<tc>, window_params = [{pipeline_mode = #tpu.pipeline_mode<synchronous>, transform_indices = @transform_0, window_bounds = array<i64: 64, 64>}, {pipeline_mode = #tpu.pipeline_mode<synchronous>, transform_indices = @transform_1, window_bounds = array<i64: 64, 128>}, {pipeline_mode = #tpu.pipeline_mode<synchronous>, transform_indices = @transform_2, window_bounds = array<i64: 64, 1>}, {pipeline_mode = #tpu.pipeline_mode<synchronous>, transform_indices = @transform_3, window_bounds = array<i64: 1, 128>}, {pipeline_mode = #tpu.pipeline_mode<synchronous>, transform_indices = @transform_4, window_bounds = array<i64: 2, 256, 256>}, {pipeline_mode = #tpu.pipeline_mode<synchronous>, transform_indices = @transform_5, window_bounds = array<i64: 2, 256, 256>}, {pipeline_mode = #tpu.pipeline_mode<synchronous>, transform_indices = @transform_6, window_bounds = array<i64: 2, 1, 256>}, {pipeline_mode = #tpu.pipeline_mode<synchronous>, transform_indices = @transform_7, window_bounds = array<i64: 2, 1, 256>}, {pipeline_mode = #tpu.pipeline_mode<synchronous>, transform_indices = @transform_8, window_bounds = array<i64: 2, 1, 256>}, {pipeline_mode = #tpu.pipeline_mode<synchronous>, transform_indices = @transform_9, window_bounds = array<i64: 2, 1, 256>}, {pipeline_mode = #tpu.pipeline_mode<synchronous>, transform_indices = @transform_10, window_bounds = array<i64: 1, 1>}]} {
    %c0 = arith.constant 0 : index
    %c0_0 = arith.constant 0 : index
    %0 = vector.load %arg1[%c0, %c0_0] : memref<64x64xbf16, #tpu.memory_space<vmem>>, vector<64x64xbf16>
    %c0_1 = arith.constant 0 : index
    %c0_2 = arith.constant 0 : index
    %1 = vector.load %arg2[%c0_1, %c0_2] : memref<64x128xf32, #tpu.memory_space<vmem>>, vector<64x128xf32>
    %c0_3 = arith.constant 0 : index
    %c0_4 = arith.constant 0 : index
    %2 = vector.load %arg4[%c0_3, %c0_4] : memref<1x128xf32, #tpu.memory_space<vmem>>, vector<1x128xf32>
    %c0_5 = arith.constant 0 : index
    %c0_6 = arith.constant 0 : index
    %3 = vector.load %arg3[%c0_5, %c0_6] : memref<64x1xf32, #tpu.memory_space<vmem>>, vector<64x1xf32>
    %4 = arith.truncf %3 : vector<64x1xf32> to vector<64x1xbf16>
    %cst = arith.constant dense<0.000000e+00> : vector<64x1xf32>
    %5 = tpu.matmul %0, %4, %cst {dimension_numbers = #tpu.dot_dimension_numbers<[1], [0], [0], [1], [0, 0, 1, 1], [], []>} : vector<64x64xbf16>, vector<64x1xbf16>, vector<64x1xf32> -> vector<64x1xf32>
    %6 = arith.addf %3, %5 : vector<64x1xf32>
    %cst_7 = arith.constant 1.000000e+00 : f32
    %7 = vector.broadcast %cst_7 : f32 to vector<64x1xf32>
    %8 = arith.minimumf %6, %7 : vector<64x1xf32>
    %9 = arith.truncf %8 : vector<64x1xf32> to vector<64x1xbf16>
    %cst_8 = arith.constant dense<0.000000e+00> : vector<64x1xf32>
    %10 = tpu.matmul %0, %9, %cst_8 {dimension_numbers = #tpu.dot_dimension_numbers<[1], [0], [0], [1], [0, 0, 1, 1], [], []>} : vector<64x64xbf16>, vector<64x1xbf16>, vector<64x1xf32> -> vector<64x1xf32>
    %11 = arith.addf %8, %10 : vector<64x1xf32>
    %cst_9 = arith.constant 1.000000e+00 : f32
    %12 = vector.broadcast %cst_9 : f32 to vector<64x1xf32>
    %13 = arith.minimumf %11, %12 : vector<64x1xf32>
    %cst_10 = arith.constant 1.000000e+00 : f32
    %14 = vector.broadcast %cst_10 : f32 to vector<64x1xf32>
    %15 = arith.subf %14, %8 : vector<64x1xf32>
    %16 = arith.mulf %13, %15 : vector<64x1xf32>
    %cst_11 = arith.constant 1.000000e+00 : f32
    %17 = vector.broadcast %cst_11 : f32 to vector<64x1xf32>
    %18 = arith.subf %17, %16 : vector<64x1xf32>
    %19 = vector.broadcast %18 : vector<64x1xf32> to vector<64x128xf32>
    %20 = arith.mulf %1, %19 : vector<64x128xf32>
    %21 = vector.broadcast %2 : vector<1x128xf32> to vector<64x128xf32>
    %22 = vector.broadcast %16 : vector<64x1xf32> to vector<64x128xf32>
    %23 = arith.mulf %21, %22 : vector<64x128xf32>
    %24 = arith.addf %20, %23 : vector<64x128xf32>
    %25 = tpu.concatenate %24, %1 in 1 : vector<64x128xf32>, vector<64x128xf32> -> vector<64x256xf32>
    %26 = arith.truncf %25 : vector<64x256xf32> to vector<64x256xbf16>
    %cst_12 = arith.constant dense<0.000000e+00> : vector<64x256xf32>
    %27 = tpu.matmul %0, %26, %cst_12 {dimension_numbers = #tpu.dot_dimension_numbers<[1], [0], [0], [1], [0, 0, 1, 1], [], []>} : vector<64x64xbf16>, vector<64x256xbf16>, vector<64x256xf32> -> vector<64x256xf32>
    %28 = arith.addf %27, %25 : vector<64x256xf32>
    %29 = arith.truncf %28 : vector<64x256xf32> to vector<64x256xbf16>
    %c0_13 = arith.constant 0 : index
    %c0_14 = arith.constant 0 : index
    %c0_15 = arith.constant 0 : index
    %30 = vector.load %arg5[%c0_13, %c0_14, %c0_15] : memref<2x256x256xbf16, #tpu.memory_space<vmem>>, vector<1x256x256xbf16>
    %31 = vector.shape_cast %30 : vector<1x256x256xbf16> to vector<256x256xbf16>
    %cst_16 = arith.constant dense<0.000000e+00> : vector<64x256xf32>
    %32 = tpu.matmul %29, %31, %cst_16 {dimension_numbers = #tpu.dot_dimension_numbers<[1], [0], [0], [1], [0, 0, 1, 1], [], []>} : vector<64x256xbf16>, vector<256x256xbf16>, vector<64x256xf32> -> vector<64x256xf32>
    %c0_17 = arith.constant 0 : index
    %c0_18 = arith.constant 0 : index
    %c0_19 = arith.constant 0 : index
    %33 = vector.load %arg7[%c0_17, %c0_18, %c0_19] : memref<2x1x256xf32, #tpu.memory_space<vmem>>, vector<1x1x256xf32>
    %34 = vector.shape_cast %33 : vector<1x1x256xf32> to vector<1x256xf32>
    %c0_20 = arith.constant 0 : index
    %c0_21 = arith.constant 0 : index
    %c0_22 = arith.constant 0 : index
    %35 = vector.load %arg8[%c0_20, %c0_21, %c0_22] : memref<2x1x256xf32, #tpu.memory_space<vmem>>, vector<1x1x256xf32>
    %36 = vector.shape_cast %35 : vector<1x1x256xf32> to vector<1x256xf32>
    %cst_23 = arith.constant dense<0.000000e+00> : vector<256xf32>
    %37 = vector.multi_reduction <add>, %32, %cst_23 [0] : vector<64x256xf32> to vector<256xf32>
    %38 = vector.shape_cast %37 : vector<256xf32> to vector<1x256xf32>
    %39 = arith.mulf %32, %32 : vector<64x256xf32>
    %cst_24 = arith.constant dense<0.000000e+00> : vector<256xf32>
    %40 = vector.multi_reduction <add>, %39, %cst_24 [0] : vector<64x256xf32> to vector<256xf32>
    %41 = vector.shape_cast %40 : vector<256xf32> to vector<1x256xf32>
    %cst_25 = arith.constant 1.562500e-02 : f32
    %42 = vector.broadcast %cst_25 : f32 to vector<1x256xf32>
    %43 = arith.mulf %38, %42 : vector<1x256xf32>
    %cst_26 = arith.constant 1.562500e-02 : f32
    %44 = vector.broadcast %cst_26 : f32 to vector<1x256xf32>
    %45 = arith.mulf %41, %44 : vector<1x256xf32>
    %46 = arith.mulf %43, %43 : vector<1x256xf32>
    %47 = arith.subf %45, %46 : vector<1x256xf32>
    %cst_27 = arith.constant 0.000000e+00 : f32
    %48 = vector.broadcast %cst_27 : f32 to vector<1x256xf32>
    %49 = arith.maximumf %47, %48 : vector<1x256xf32>
    %50 = vector.broadcast %43 : vector<1x256xf32> to vector<64x256xf32>
    %51 = arith.subf %32, %50 : vector<64x256xf32>
    %cst_28 = arith.constant 9.99999974E-6 : f32
    %52 = vector.broadcast %cst_28 : f32 to vector<1x256xf32>
    %53 = arith.addf %49, %52 : vector<1x256xf32>
    %54 = math.rsqrt %53 : vector<1x256xf32>
    %55 = vector.broadcast %54 : vector<1x256xf32> to vector<64x256xf32>
    %56 = arith.mulf %51, %55 : vector<64x256xf32>
    %57 = vector.broadcast %34 : vector<1x256xf32> to vector<64x256xf32>
    %58 = arith.mulf %56, %57 : vector<64x256xf32>
    %59 = vector.broadcast %36 : vector<1x256xf32> to vector<64x256xf32>
    %60 = arith.addf %58, %59 : vector<64x256xf32>
    %cst_29 = arith.constant 0.000000e+00 : f32
    %61 = vector.broadcast %cst_29 : f32 to vector<64x256xf32>
    %62 = arith.maximumf %60, %61 : vector<64x256xf32>
    %63 = arith.truncf %62 : vector<64x256xf32> to vector<64x256xbf16>
    %c0_30 = arith.constant 0 : index
    %c0_31 = arith.constant 0 : index
    %c0_32 = arith.constant 0 : index
    %64 = vector.load %arg6[%c0_30, %c0_31, %c0_32] : memref<2x256x256xbf16, #tpu.memory_space<vmem>>, vector<1x256x256xbf16>
    %65 = vector.shape_cast %64 : vector<1x256x256xbf16> to vector<256x256xbf16>
    %cst_33 = arith.constant dense<0.000000e+00> : vector<64x256xf32>
    %66 = tpu.matmul %63, %65, %cst_33 {dimension_numbers = #tpu.dot_dimension_numbers<[1], [0], [0], [1], [0, 0, 1, 1], [], []>} : vector<64x256xbf16>, vector<256x256xbf16>, vector<64x256xf32> -> vector<64x256xf32>
    %c0_34 = arith.constant 0 : index
    %c0_35 = arith.constant 0 : index
    %c0_36 = arith.constant 0 : index
    %67 = vector.load %arg9[%c0_34, %c0_35, %c0_36] : memref<2x1x256xf32, #tpu.memory_space<vmem>>, vector<1x1x256xf32>
    %68 = vector.shape_cast %67 : vector<1x1x256xf32> to vector<1x256xf32>
    %c0_37 = arith.constant 0 : index
    %c0_38 = arith.constant 0 : index
    %c0_39 = arith.constant 0 : index
    %69 = vector.load %arg10[%c0_37, %c0_38, %c0_39] : memref<2x1x256xf32, #tpu.memory_space<vmem>>, vector<1x1x256xf32>
    %70 = vector.shape_cast %69 : vector<1x1x256xf32> to vector<1x256xf32>
    %cst_40 = arith.constant dense<0.000000e+00> : vector<256xf32>
    %71 = vector.multi_reduction <add>, %66, %cst_40 [0] : vector<64x256xf32> to vector<256xf32>
    %72 = vector.shape_cast %71 : vector<256xf32> to vector<1x256xf32>
    %73 = arith.mulf %66, %66 : vector<64x256xf32>
    %cst_41 = arith.constant dense<0.000000e+00> : vector<256xf32>
    %74 = vector.multi_reduction <add>, %73, %cst_41 [0] : vector<64x256xf32> to vector<256xf32>
    %75 = vector.shape_cast %74 : vector<256xf32> to vector<1x256xf32>
    %cst_42 = arith.constant 1.562500e-02 : f32
    %76 = vector.broadcast %cst_42 : f32 to vector<1x256xf32>
    %77 = arith.mulf %72, %76 : vector<1x256xf32>
    %cst_43 = arith.constant 1.562500e-02 : f32
    %78 = vector.broadcast %cst_43 : f32 to vector<1x256xf32>
    %79 = arith.mulf %75, %78 : vector<1x256xf32>
    %80 = arith.mulf %77, %77 : vector<1x256xf32>
    %81 = arith.subf %79, %80 : vector<1x256xf32>
    %cst_44 = arith.constant 0.000000e+00 : f32
    %82 = vector.broadcast %cst_44 : f32 to vector<1x256xf32>
    %83 = arith.maximumf %81, %82 : vector<1x256xf32>
    %84 = vector.broadcast %77 : vector<1x256xf32> to vector<64x256xf32>
    %85 = arith.subf %66, %84 : vector<64x256xf32>
    %cst_45 = arith.constant 9.99999974E-6 : f32
    %86 = vector.broadcast %cst_45 : f32 to vector<1x256xf32>
    %87 = arith.addf %83, %86 : vector<1x256xf32>
    %88 = math.rsqrt %87 : vector<1x256xf32>
    %89 = vector.broadcast %88 : vector<1x256xf32> to vector<64x256xf32>
    %90 = arith.mulf %85, %89 : vector<64x256xf32>
    %91 = vector.broadcast %68 : vector<1x256xf32> to vector<64x256xf32>
    %92 = arith.mulf %90, %91 : vector<64x256xf32>
    %93 = vector.broadcast %70 : vector<1x256xf32> to vector<64x256xf32>
    %94 = arith.addf %92, %93 : vector<64x256xf32>
    %cst_46 = arith.constant 0.000000e+00 : f32
    %95 = vector.broadcast %cst_46 : f32 to vector<64x256xf32>
    %96 = arith.maximumf %94, %95 : vector<64x256xf32>
    %97 = arith.truncf %96 : vector<64x256xf32> to vector<64x256xbf16>
    %cst_47 = arith.constant dense<0.000000e+00> : vector<64x256xf32>
    %98 = tpu.matmul %0, %97, %cst_47 {dimension_numbers = #tpu.dot_dimension_numbers<[1], [0], [0], [1], [0, 0, 1, 1], [], []>} : vector<64x64xbf16>, vector<64x256xbf16>, vector<64x256xf32> -> vector<64x256xf32>
    %99 = arith.addf %98, %96 : vector<64x256xf32>
    %100 = arith.truncf %99 : vector<64x256xf32> to vector<64x256xbf16>
    %c1 = arith.constant 1 : index
    %c0_48 = arith.constant 0 : index
    %c0_49 = arith.constant 0 : index
    %101 = vector.load %arg5[%c1, %c0_48, %c0_49] : memref<2x256x256xbf16, #tpu.memory_space<vmem>>, vector<1x256x256xbf16>
    %102 = vector.shape_cast %101 : vector<1x256x256xbf16> to vector<256x256xbf16>
    %cst_50 = arith.constant dense<0.000000e+00> : vector<64x256xf32>
    %103 = tpu.matmul %100, %102, %cst_50 {dimension_numbers = #tpu.dot_dimension_numbers<[1], [0], [0], [1], [0, 0, 1, 1], [], []>} : vector<64x256xbf16>, vector<256x256xbf16>, vector<64x256xf32> -> vector<64x256xf32>
    %c1_51 = arith.constant 1 : index
    %c0_52 = arith.constant 0 : index
    %c0_53 = arith.constant 0 : index
    %104 = vector.load %arg7[%c1_51, %c0_52, %c0_53] : memref<2x1x256xf32, #tpu.memory_space<vmem>>, vector<1x1x256xf32>
    %105 = vector.shape_cast %104 : vector<1x1x256xf32> to vector<1x256xf32>
    %c1_54 = arith.constant 1 : index
    %c0_55 = arith.constant 0 : index
    %c0_56 = arith.constant 0 : index
    %106 = vector.load %arg8[%c1_54, %c0_55, %c0_56] : memref<2x1x256xf32, #tpu.memory_space<vmem>>, vector<1x1x256xf32>
    %107 = vector.shape_cast %106 : vector<1x1x256xf32> to vector<1x256xf32>
    %cst_57 = arith.constant dense<0.000000e+00> : vector<256xf32>
    %108 = vector.multi_reduction <add>, %103, %cst_57 [0] : vector<64x256xf32> to vector<256xf32>
    %109 = vector.shape_cast %108 : vector<256xf32> to vector<1x256xf32>
    %110 = arith.mulf %103, %103 : vector<64x256xf32>
    %cst_58 = arith.constant dense<0.000000e+00> : vector<256xf32>
    %111 = vector.multi_reduction <add>, %110, %cst_58 [0] : vector<64x256xf32> to vector<256xf32>
    %112 = vector.shape_cast %111 : vector<256xf32> to vector<1x256xf32>
    %cst_59 = arith.constant 1.562500e-02 : f32
    %113 = vector.broadcast %cst_59 : f32 to vector<1x256xf32>
    %114 = arith.mulf %109, %113 : vector<1x256xf32>
    %cst_60 = arith.constant 1.562500e-02 : f32
    %115 = vector.broadcast %cst_60 : f32 to vector<1x256xf32>
    %116 = arith.mulf %112, %115 : vector<1x256xf32>
    %117 = arith.mulf %114, %114 : vector<1x256xf32>
    %118 = arith.subf %116, %117 : vector<1x256xf32>
    %cst_61 = arith.constant 0.000000e+00 : f32
    %119 = vector.broadcast %cst_61 : f32 to vector<1x256xf32>
    %120 = arith.maximumf %118, %119 : vector<1x256xf32>
    %121 = vector.broadcast %114 : vector<1x256xf32> to vector<64x256xf32>
    %122 = arith.subf %103, %121 : vector<64x256xf32>
    %cst_62 = arith.constant 9.99999974E-6 : f32
    %123 = vector.broadcast %cst_62 : f32 to vector<1x256xf32>
    %124 = arith.addf %120, %123 : vector<1x256xf32>
    %125 = math.rsqrt %124 : vector<1x256xf32>
    %126 = vector.broadcast %125 : vector<1x256xf32> to vector<64x256xf32>
    %127 = arith.mulf %122, %126 : vector<64x256xf32>
    %128 = vector.broadcast %105 : vector<1x256xf32> to vector<64x256xf32>
    %129 = arith.mulf %127, %128 : vector<64x256xf32>
    %130 = vector.broadcast %107 : vector<1x256xf32> to vector<64x256xf32>
    %131 = arith.addf %129, %130 : vector<64x256xf32>
    %cst_63 = arith.constant 0.000000e+00 : f32
    %132 = vector.broadcast %cst_63 : f32 to vector<64x256xf32>
    %133 = arith.maximumf %131, %132 : vector<64x256xf32>
    %134 = arith.truncf %133 : vector<64x256xf32> to vector<64x256xbf16>
    %c1_64 = arith.constant 1 : index
    %c0_65 = arith.constant 0 : index
    %c0_66 = arith.constant 0 : index
    %135 = vector.load %arg6[%c1_64, %c0_65, %c0_66] : memref<2x256x256xbf16, #tpu.memory_space<vmem>>, vector<1x256x256xbf16>
    %136 = vector.shape_cast %135 : vector<1x256x256xbf16> to vector<256x256xbf16>
    %cst_67 = arith.constant dense<0.000000e+00> : vector<64x256xf32>
    %137 = tpu.matmul %134, %136, %cst_67 {dimension_numbers = #tpu.dot_dimension_numbers<[1], [0], [0], [1], [0, 0, 1, 1], [], []>} : vector<64x256xbf16>, vector<256x256xbf16>, vector<64x256xf32> -> vector<64x256xf32>
    %c1_68 = arith.constant 1 : index
    %c0_69 = arith.constant 0 : index
    %c0_70 = arith.constant 0 : index
    %138 = vector.load %arg9[%c1_68, %c0_69, %c0_70] : memref<2x1x256xf32, #tpu.memory_space<vmem>>, vector<1x1x256xf32>
    %139 = vector.shape_cast %138 : vector<1x1x256xf32> to vector<1x256xf32>
    %c1_71 = arith.constant 1 : index
    %c0_72 = arith.constant 0 : index
    %c0_73 = arith.constant 0 : index
    %140 = vector.load %arg10[%c1_71, %c0_72, %c0_73] : memref<2x1x256xf32, #tpu.memory_space<vmem>>, vector<1x1x256xf32>
    %141 = vector.shape_cast %140 : vector<1x1x256xf32> to vector<1x256xf32>
    %cst_74 = arith.constant dense<0.000000e+00> : vector<256xf32>
    %142 = vector.multi_reduction <add>, %137, %cst_74 [0] : vector<64x256xf32> to vector<256xf32>
    %143 = vector.shape_cast %142 : vector<256xf32> to vector<1x256xf32>
    %144 = arith.mulf %137, %137 : vector<64x256xf32>
    %cst_75 = arith.constant dense<0.000000e+00> : vector<256xf32>
    %145 = vector.multi_reduction <add>, %144, %cst_75 [0] : vector<64x256xf32> to vector<256xf32>
    %146 = vector.shape_cast %145 : vector<256xf32> to vector<1x256xf32>
    %cst_76 = arith.constant 1.562500e-02 : f32
    %147 = vector.broadcast %cst_76 : f32 to vector<1x256xf32>
    %148 = arith.mulf %143, %147 : vector<1x256xf32>
    %cst_77 = arith.constant 1.562500e-02 : f32
    %149 = vector.broadcast %cst_77 : f32 to vector<1x256xf32>
    %150 = arith.mulf %146, %149 : vector<1x256xf32>
    %151 = arith.mulf %148, %148 : vector<1x256xf32>
    %152 = arith.subf %150, %151 : vector<1x256xf32>
    %cst_78 = arith.constant 0.000000e+00 : f32
    %153 = vector.broadcast %cst_78 : f32 to vector<1x256xf32>
    %154 = arith.maximumf %152, %153 : vector<1x256xf32>
    %155 = vector.broadcast %148 : vector<1x256xf32> to vector<64x256xf32>
    %156 = arith.subf %137, %155 : vector<64x256xf32>
    %cst_79 = arith.constant 9.99999974E-6 : f32
    %157 = vector.broadcast %cst_79 : f32 to vector<1x256xf32>
    %158 = arith.addf %154, %157 : vector<1x256xf32>
    %159 = math.rsqrt %158 : vector<1x256xf32>
    %160 = vector.broadcast %159 : vector<1x256xf32> to vector<64x256xf32>
    %161 = arith.mulf %156, %160 : vector<64x256xf32>
    %162 = vector.broadcast %139 : vector<1x256xf32> to vector<64x256xf32>
    %163 = arith.mulf %161, %162 : vector<64x256xf32>
    %164 = vector.broadcast %141 : vector<1x256xf32> to vector<64x256xf32>
    %165 = arith.addf %163, %164 : vector<64x256xf32>
    %cst_80 = arith.constant 0.000000e+00 : f32
    %166 = vector.broadcast %cst_80 : f32 to vector<64x256xf32>
    %167 = arith.maximumf %165, %166 : vector<64x256xf32>
    %168 = vector.extract_strided_slice %167 {offsets = [0, 0], sizes = [64, 128], strides = [1, 1]} : vector<64x256xf32> to vector<64x128xf32>
    %169 = vector.extract_strided_slice %167 {offsets = [0, 128], sizes = [64, 128], strides = [1, 1]} : vector<64x256xf32> to vector<64x128xf32>
    %170 = arith.mulf %168, %168 : vector<64x128xf32>
    %cst_81 = arith.constant dense<0.000000e+00> : vector<64xf32>
    %171 = vector.multi_reduction <add>, %170, %cst_81 [1] : vector<64x128xf32> to vector<64xf32>
    %172 = vector.shape_cast %171 : vector<64xf32> to vector<64x1xf32>
    %cst_82 = arith.constant 1.000000e-24 : f32
    %173 = vector.broadcast %cst_82 : f32 to vector<64x1xf32>
    %174 = arith.maximumf %172, %173 : vector<64x1xf32>
    %175 = math.rsqrt %174 : vector<64x1xf32>
    %176 = arith.mulf %169, %169 : vector<64x128xf32>
    %cst_83 = arith.constant dense<0.000000e+00> : vector<64xf32>
    %177 = vector.multi_reduction <add>, %176, %cst_83 [1] : vector<64x128xf32> to vector<64xf32>
    %178 = vector.shape_cast %177 : vector<64xf32> to vector<64x1xf32>
    %cst_84 = arith.constant 1.000000e-24 : f32
    %179 = vector.broadcast %cst_84 : f32 to vector<64x1xf32>
    %180 = arith.maximumf %178, %179 : vector<64x1xf32>
    %181 = math.rsqrt %180 : vector<64x1xf32>
    %182 = arith.mulf %168, %169 : vector<64x128xf32>
    %cst_85 = arith.constant dense<0.000000e+00> : vector<64xf32>
    %183 = vector.multi_reduction <add>, %182, %cst_85 [1] : vector<64x128xf32> to vector<64xf32>
    %184 = vector.shape_cast %183 : vector<64xf32> to vector<64x1xf32>
    %185 = arith.mulf %184, %175 : vector<64x1xf32>
    %186 = arith.mulf %185, %181 : vector<64x1xf32>
    %cst_86 = arith.constant 1.000000e+00 : f32
    %187 = vector.broadcast %cst_86 : f32 to vector<64x1xf32>
    %188 = arith.subf %187, %186 : vector<64x1xf32>
    %189 = arith.mulf %188, %16 : vector<64x1xf32>
    %cst_87 = arith.constant dense<0.000000e+00> : vector<1xf32>
    %190 = vector.multi_reduction <add>, %189, %cst_87 [0] : vector<64x1xf32> to vector<1xf32>
    %191 = vector.shape_cast %190 : vector<1xf32> to vector<1x1xf32>
    %cst_88 = arith.constant dense<0.000000e+00> : vector<1xf32>
    %192 = vector.multi_reduction <add>, %16, %cst_88 [0] : vector<64x1xf32> to vector<1xf32>
    %193 = vector.shape_cast %192 : vector<1xf32> to vector<1x1xf32>
    %cst_89 = arith.constant 1.000000e+00 : f32
    %194 = vector.broadcast %cst_89 : f32 to vector<1x1xf32>
    %195 = arith.maximumf %193, %194 : vector<1x1xf32>
    %196 = arith.divf %191, %195 : vector<1x1xf32>
    %c0_90 = arith.constant 0 : index
    %c0_91 = arith.constant 0 : index
    %197 = vector.load %arg11[%c0_90, %c0_91] : memref<1x1xf32, #tpu.memory_space<vmem>>, vector<1x1xf32>
    tpu.vector_store %arg11[%c0_90, %c0_91], %196 {strides = array<i32>} : memref<1x1xf32, #tpu.memory_space<vmem>>, vector<1x1xf32>,
    return
  }
  func.func @transform_0(%arg0: i32) -> (i32, i32) {
    %c0_i32 = arith.constant 0 : i32
    %c0_i32_0 = arith.constant 0 : i32
    %c0_i32_1 = arith.constant 0 : i32
    return %c0_i32, %c0_i32_0 : i32, i32
  }
  func.func @transform_1(%arg0: i32) -> (i32, i32) {
    %c0_i32 = arith.constant 0 : i32
    %c0_i32_0 = arith.constant 0 : i32
    %c0_i32_1 = arith.constant 0 : i32
    return %c0_i32, %c0_i32_0 : i32, i32
  }
  func.func @transform_2(%arg0: i32) -> (i32, i32) {
    %c0_i32 = arith.constant 0 : i32
    %c0_i32_0 = arith.constant 0 : i32
    %c0_i32_1 = arith.constant 0 : i32
    return %c0_i32, %c0_i32_0 : i32, i32
  }
  func.func @transform_3(%arg0: i32) -> (i32, i32) {
    %c0_i32 = arith.constant 0 : i32
    %c0_i32_0 = arith.constant 0 : i32
    %c0_i32_1 = arith.constant 0 : i32
    return %c0_i32, %c0_i32_0 : i32, i32
  }
  func.func @transform_4(%arg0: i32) -> (i32, i32, i32) {
    %c0_i32 = arith.constant 0 : i32
    %c0_i32_0 = arith.constant 0 : i32
    %c0_i32_1 = arith.constant 0 : i32
    %c0_i32_2 = arith.constant 0 : i32
    return %c0_i32, %c0_i32_0, %c0_i32_1 : i32, i32, i32
  }
  func.func @transform_5(%arg0: i32) -> (i32, i32, i32) {
    %c0_i32 = arith.constant 0 : i32
    %c0_i32_0 = arith.constant 0 : i32
    %c0_i32_1 = arith.constant 0 : i32
    %c0_i32_2 = arith.constant 0 : i32
    return %c0_i32, %c0_i32_0, %c0_i32_1 : i32, i32, i32
  }
  func.func @transform_6(%arg0: i32) -> (i32, i32, i32) {
    %c0_i32 = arith.constant 0 : i32
    %c0_i32_0 = arith.constant 0 : i32
    %c0_i32_1 = arith.constant 0 : i32
    %c0_i32_2 = arith.constant 0 : i32
    return %c0_i32, %c0_i32_0, %c0_i32_1 : i32, i32, i32
  }
  func.func @transform_7(%arg0: i32) -> (i32, i32, i32) {
    %c0_i32 = arith.constant 0 : i32
    %c0_i32_0 = arith.constant 0 : i32
    %c0_i32_1 = arith.constant 0 : i32
    %c0_i32_2 = arith.constant 0 : i32
    return %c0_i32, %c0_i32_0, %c0_i32_1 : i32, i32, i32
  }
  func.func @transform_8(%arg0: i32) -> (i32, i32, i32) {
    %c0_i32 = arith.constant 0 : i32
    %c0_i32_0 = arith.constant 0 : i32
    %c0_i32_1 = arith.constant 0 : i32
    %c0_i32_2 = arith.constant 0 : i32
    return %c0_i32, %c0_i32_0, %c0_i32_1 : i32, i32, i32
  }
  func.func @transform_9(%arg0: i32) -> (i32, i32, i32) {
    %c0_i32 = arith.constant 0 : i32
    %c0_i32_0 = arith.constant 0 : i32
    %c0_i32_1 = arith.constant 0 : i32
    %c0_i32_2 = arith.constant 0 : i32
    return %c0_i32, %c0_i32_0, %c0_i32_1 : i32, i32, i32
  }
  func.func @transform_10(%arg0: i32) -> (i32, i32) {
    %c0_i32 = arith.constant 0 : i32
    %c0_i32_0 = arith.constant 0 : i32
    %c0_i32_1 = arith.constant 0 : i32
    return %c0_i32, %c0_i32_0 : i32, i32
  }
}

</mosaic_0001>

<llo_original>
// kernel: tpu_custom_call.1
$region0: #{tpu_custom_call.1}
  #allocation0 [shape = 'u32[]', space=smem, size = 0x4, offset = 0x4, fixed_abs, tag = 'smem constant byte address 0x4 - core index']
  #allocation1 [shape = 'u32[144,128]{1,0:T(1,128)}', space=vmem, size = 0x12000, scoped, tag = 'internal scratch']
  %s0 = inlined_call_operand.hbm [shape: bf16[64,64], index: 0, kind: input, shape index: {}]
  %s1 = inlined_call_operand.vmem [shape: f32[64,128], index: 1, kind: input, shape index: {}]
  %s2 = inlined_call_operand.vmem [shape: f32[64,1], index: 2, kind: input, shape index: {}]
  %s3 = inlined_call_operand.hbm [shape: f32[1,128], index: 3, kind: input, shape index: {}]
  %s4 = inlined_call_operand.hbm [shape: bf16[2,256,256], index: 4, kind: input, shape index: {}]
  %s5 = inlined_call_operand.hbm [shape: bf16[2,256,256], index: 5, kind: input, shape index: {}]
  %s6 = inlined_call_operand.vmem [shape: f32[2,1,256], index: 6, kind: input, shape index: {}]
  %s7 = inlined_call_operand.vmem [shape: f32[2,1,256], index: 7, kind: input, shape index: {}]
  %s8 = inlined_call_operand.vmem [shape: f32[2,1,256], index: 8, kind: input, shape index: {}]
  %s9 = inlined_call_operand.vmem [shape: f32[2,1,256], index: 9, kind: input, shape index: {}]
  %s10 = inlined_call_operand.hbm [shape: f32[1,1], index: 10, kind: output, shape index: {}]
  %s11 = sld [smem:[#allocation0]]
  $region66: #{tpu_custom_call.1} parent=0
    _
  %s13 = ssub.s32 1, %s11
  %s14 = scalar_select 0, %s13, %s11
  $region1: #{tpu_custom_call.1} parent=0
    #allocation2 [shape = 'u8[16384]{0}', space=vmem, size = 0x4000, scoped, tag = 'input window, operand 0, single buffered']
    #allocation3 [shape = 's32[1]{0}', space=sflag, size = 0x4, scoped, tag = 'scoped memory for tpu_custom_call.1']
    #allocation4 [shape = 's32[1]{0}', space=sflag, size = 0x4, scoped, tag = 'scoped memory for tpu_custom_call.1']
    #allocation5 [shape = 'u8[512]{0}', space=vmem, size = 0x400, scoped, tag = 'input window, operand 3, single buffered']
    #allocation6 [shape = 's32[1]{0}', space=sflag, size = 0x4, scoped, tag = 'scoped memory for tpu_custom_call.1']
    #allocation7 [shape = 'u8[262144]{0}', space=vmem, size = 0x40000, scoped, tag = 'input window, operand 4, single buffered']
    #allocation8 [shape = 'u8[262144]{0}', space=vmem, size = 0x40000, scoped, tag = 'input window, operand 5, single buffered']
    #allocation9 [shape = 's32[1]{0}', space=sflag, size = 0x4, scoped, tag = 'scoped memory for tpu_custom_call.1']
    #allocation10 [shape = 'u8[512]{0}', space=vmem, size = 0x400, scoped, tag = 'output window, operand 0, single buffered']
    %15 = vsyncpa [#allocation3], 0
    %16 = vsyncpa [#allocation6], 0
    %17 = vsyncpa [#allocation9], 0
    %18 = vsyncpa [#allocation4], 0
    // Predicated region
    $region2: #{tpu_custom_call.1} parent=1 // pred_check
      _
    $region3: #{tpu_custom_call.1} parent=1 // pred_check_branch
      %20 = sbr.rel (0) target = $region5
    $region4: #{tpu_custom_call.1} parent=1 // pred_region
      %s22 = ssub.s32 512, 512
      %23 = vsyncadd [#allocation3], %s22
      %s24 = sshll.u32 [#allocation2], 4
      %s25 = int_to_ptr.vmem [resolvable:$true] %s24
      %30 = dma.hbm_to_vmem [thread:$0]  %s0, 512, %s25, [#allocation3], 64, 64, 4
    $region5: #{tpu_custom_call.1} parent=1 // pred_fallthru
      _
    // Predicated region
    $region6: #{tpu_custom_call.1} parent=1 // pred_check
      _
    $region7: #{tpu_custom_call.1} parent=1 // pred_check_branch
      %32 = sbr.rel (0) target = $region9
    $region8: #{tpu_custom_call.1} parent=1 // pred_region
      _
    $region9: #{tpu_custom_call.1} parent=1 // pred_fallthru
      _
    // Predicated region
    $region10: #{tpu_custom_call.1} parent=1 // pred_check
      _
    $region11: #{tpu_custom_call.1} parent=1 // pred_check_branch
      %34 = sbr.rel (0) target = $region13
    $region12: #{tpu_custom_call.1} parent=1 // pred_region
      _
    $region13: #{tpu_custom_call.1} parent=1 // pred_fallthru
      _
    // Predicated region
    $region14: #{tpu_custom_call.1} parent=1 // pred_check
      _
    $region15: #{tpu_custom_call.1} parent=1 // pred_check_branch
      %36 = sbr.rel (0) target = $region17
    $region16: #{tpu_custom_call.1} parent=1 // pred_region
      %s38 = ssub.s32 16, 16
      %39 = vsyncadd [#allocation6], %s38
      %s41 = sshll.u32 [#allocation5], 4
      %s42 = int_to_ptr.vmem [resolvable:$true] %s41
      %44 = dma.hbm_to_vmem [thread:$0]  %s3, 16, %s42, [#allocation6]
    $region17: #{tpu_custom_call.1} parent=1 // pred_fallthru
      _
    // Predicated region
    $region18: #{tpu_custom_call.1} parent=1 // pred_check
      _
    $region19: #{tpu_custom_call.1} parent=1 // pred_check_branch
      %46 = sbr.rel (0) target = $region21
    $region20: #{tpu_custom_call.1} parent=1 // pred_region
      %s48 = ssub.s32 8192, 8192
      %49 = vsyncadd [#allocation6], %s48
      %s50 = sshll.u32 [#allocation7], 4
      %s51 = int_to_ptr.vmem [resolvable:$true] %s50
      %56 = dma.hbm_to_vmem [thread:$0]  %s4, 8192, %s51, [#allocation6], 128, 128, 8
    $region21: #{tpu_custom_call.1} parent=1 // pred_fallthru
      _
    // Predicated region
    $region22: #{tpu_custom_call.1} parent=1 // pred_check
      _
    $region23: #{tpu_custom_call.1} parent=1 // pred_check_branch
      %58 = sbr.rel (0) target = $region25
    $region24: #{tpu_custom_call.1} parent=1 // pred_region
      %s60 = ssub.s32 8192, 8192
      %61 = vsyncadd [#allocation9], %s60
      %s62 = sshll.u32 [#allocation8], 4
      %s63 = int_to_ptr.vmem [resolvable:$true] %s62
      %68 = dma.hbm_to_vmem [thread:$0]  %s5, 8192, %s63, [#allocation9], 128, 128, 8
    $region25: #{tpu_custom_call.1} parent=1 // pred_fallthru
      _
    // Predicated region
    $region26: #{tpu_custom_call.1} parent=1 // pred_check
      _
    $region27: #{tpu_custom_call.1} parent=1 // pred_check_branch
      %70 = sbr.rel (0) target = $region29
    $region28: #{tpu_custom_call.1} parent=1 // pred_region
      _
    $region29: #{tpu_custom_call.1} parent=1 // pred_fallthru
      _
    // Predicated region
    $region30: #{tpu_custom_call.1} parent=1 // pred_check
      _
    $region31: #{tpu_custom_call.1} parent=1 // pred_check_branch
      %72 = sbr.rel (0) target = $region33
    $region32: #{tpu_custom_call.1} parent=1 // pred_region
      _
    $region33: #{tpu_custom_call.1} parent=1 // pred_fallthru
      _
    // Predicated region
    $region34: #{tpu_custom_call.1} parent=1 // pred_check
      _
    $region35: #{tpu_custom_call.1} parent=1 // pred_check_branch
      %74 = sbr.rel (0) target = $region37
    $region36: #{tpu_custom_call.1} parent=1 // pred_region
      _
    $region37: #{tpu_custom_call.1} parent=1 // pred_fallthru
      _
    // Predicated region
    $region38: #{tpu_custom_call.1} parent=1 // pred_check
      _
    $region39: #{tpu_custom_call.1} parent=1 // pred_check_branch
      %76 = sbr.rel (0) target = $region41
    $region40: #{tpu_custom_call.1} parent=1 // pred_region
      _
    $region41: #{tpu_custom_call.1} parent=1 // pred_fallthru
      _
    // Predicated region
    $region42: #{tpu_custom_call.1} parent=1 // pred_check
      _
    $region43: #{tpu_custom_call.1} parent=1 // pred_check_branch
      %78 = sbr.rel (0) target = $region45
    $region44: #{tpu_custom_call.1} parent=1 // pred_region
      %79 = dma.done [#allocation3], 512
    $region45: #{tpu_custom_call.1} parent=1 // pred_fallthru
      _
    // Predicated region
    $region46: #{tpu_custom_call.1} parent=1 // pred_check
      _
    $region47: #{tpu_custom_call.1} parent=1 // pred_check_branch
      %81 = sbr.rel (0) target = $region49
    $region48: #{tpu_custom_call.1} parent=1 // pred_region
      %82 = dma.done [#allocation6], 16
    $region49: #{tpu_custom_call.1} parent=1 // pred_fallthru
      _
    // Predicated region
    $region50: #{tpu_custom_call.1} parent=1 // pred_check
      _
    $region51: #{tpu_custom_call.1} parent=1 // pred_check_branch
      %84 = sbr.rel (0) target = $region53
    $region52: #{tpu_custom_call.1} parent=1 // pred_region
      %85 = dma.done [#allocation6], 8192
    $region53: #{tpu_custom_call.1} parent=1 // pred_fallthru
      _
    // Predicated region
    $region54: #{tpu_custom_call.1} parent=1 // pred_check
      _
    $region55: #{tpu_custom_call.1} parent=1 // pred_check_branch
      %87 = sbr.rel (0) target = $region57
    $region56: #{tpu_custom_call.1} parent=1 // pred_region
      %88 = dma.done [#allocation9], 8192
    $region57: #{tpu_custom_call.1} parent=1 // pred_fallthru
      _
    %v90 = vld [vmem:[#allocation2] sm:$0xf]
    %v91 = vld [vmem:[#allocation2 + $0x4] sm:$0xf]
    %v92 = vld [vmem:[#allocation2 + $0x8] sm:$0xf]
    %v93 = vld [vmem:[#allocation2 + $0xc] sm:$0xf]
    %v94 = vld [vmem:[#allocation2 + $0x10] sm:$0xf]
    %v95 = vld [vmem:[#allocation2 + $0x14] sm:$0xf]
    %v96 = vld [vmem:[#allocation2 + $0x18] sm:$0xf]
    %v97 = vld [vmem:[#allocation2 + $0x1c] sm:$0xf]
    %v98 = vld [vmem:[%s1] sm:$0xff]
    %v99 = vld [vmem:[%s1 + $0x8] sm:$0xff]
    %v100 = vld [vmem:[%s1 + $0x10] sm:$0xff]
    %v101 = vld [vmem:[%s1 + $0x18] sm:$0xff]
    %v102 = vld [vmem:[%s1 + $0x20] sm:$0xff]
    %v103 = vld [vmem:[%s1 + $0x28] sm:$0xff]
    %v104 = vld [vmem:[%s1 + $0x30] sm:$0xff]
    %v105 = vld [vmem:[%s1 + $0x38] sm:$0xff]
    %v106 = vld [vmem:[#allocation5] sm:$0x1]
    %v107 = vld [vmem:[%s2] sm:$0xff]
    %v108 = vld [vmem:[%s2 + $0x8] sm:$0xff]
    %v109 = vld [vmem:[%s2 + $0x10] sm:$0xff]
    %v110 = vld [vmem:[%s2 + $0x18] sm:$0xff]
    %v111 = vld [vmem:[%s2 + $0x20] sm:$0xff]
    %v112 = vld [vmem:[%s2 + $0x28] sm:$0xff]
    %v113 = vld [vmem:[%s2 + $0x30] sm:$0xff]
    %v114 = vld [vmem:[%s2 + $0x38] sm:$0xff]
    %v115 = vpack.c.bf16 %v108, %v107
    %v116 = vpack.c.bf16 %v110, %v109
    %v117 = vpack.c.bf16 %v112, %v111
    %v118 = vpack.c.bf16 %v114, %v113
    %v127 = vunpack.c.l.b16 %v90
    %v128 = vunpack.c.l.b16 %v91
    %v129 = vunpack.c.l.b16 %v92
    %v130 = vunpack.c.l.b16 %v93
    %v131 = vunpack.c.l.b16 %v94
    %v132 = vunpack.c.l.b16 %v95
    %v133 = vunpack.c.l.b16 %v96
    %v134 = vunpack.c.l.b16 %v97
    %v135 = vpack.c.b16 %v128, %v127
    %v136 = vpack.c.b16 %v130, %v129
    %v137 = vpack.c.b16 %v132, %v131
    %v138 = vpack.c.b16 %v134, %v133
    %vm139 = vcmask 523264
    %v141 = vsel %vm139, %v135, 0
    %v144 = vsel %vm139, %v136, 0
    %v147 = vsel %vm139, %v137, 0
    %v150 = vsel %vm139, %v138, 0
    %152 = vmatprep.subr.bf16.mxu0 0
    %153 = vmatpush1.bf16.msra.mxu0 %v115
    %154 = vmatprep.subr.bf16.mxu0 0
    %155 = vmatpush1.bf16.msra.mxu0 %v116
    %156 = vmatprep.subr.bf16.mxu0 0
    %157 = vmatpush1.bf16.msra.mxu0 %v117
    %158 = vmatprep.subr.bf16.mxu0 0
    %159 = vmatpush1.bf16.msra.mxu0 %v118
    %160 = vmatprep.subr.bf16.mxu0 0
    %161 = vmatpush1.bf16.msra.mxu0 0
    %162 = vmatprep.subr.bf16.mxu0 0
    %163 = vmatpush1.bf16.msra.mxu0 0
    %164 = vmatprep.subr.bf16.mxu0 0
    %165 = vmatpush1.bf16.msra.mxu0 0
    %166 = vmatprep.subr.bf16.mxu0 0
    %167 = vmatpush1.bf16.msra.mxu0 0
    %168 = vmatprep.subr.bf16.mxu0 0
    %169 = vmatpush1.bf16.msra.mxu0 0
    %170 = vmatprep.subr.bf16.mxu0 0
    %171 = vmatpush1.bf16.msra.mxu0 0
    %172 = vmatprep.subr.bf16.mxu0 0
    %173 = vmatpush1.bf16.msra.mxu0 0
    %174 = vmatprep.subr.bf16.mxu0 0
    %175 = vmatpush1.bf16.msra.mxu0 0
    %176 = vmatprep.subr.bf16.mxu0 0
    %177 = vmatpush1.bf16.msra.mxu0 0
    %178 = vmatprep.subr.bf16.mxu0 0
    %179 = vmatpush1.bf16.msra.mxu0 0
    %180 = vmatprep.subr.bf16.mxu0 0
    %181 = vmatpush1.bf16.msra.mxu0 0
    %182 = vmatprep.subr.bf16.mxu0 0
    %183 = vmatpush1.bf16.msra.mxu0 0
    %184 = vmatprep.mubr.bf16.mxu0 0
    %185 = vmatmul.mubr.bf16.gmra.mrb[0].mxu0 %v141
    %v186 = vpop.f32.mrb[0].mxu0
    %v187 = vadd.f32 0.0, %v186
    %v188 = vpop.f32.mrb[0].mxu0
    %v189 = vpop.f32.mrb[0].mxu0
    %v190 = vadd.f32 0.0, %v189
    %v191 = vpop.f32.mrb[0].mxu0
    %192 = vmatprep.mubr.bf16.mxu0 0
    %193 = vmatmul.mubr.bf16.gmra.mrb[0].mxu0 %v144
    %v194 = vpop.f32.mrb[0].mxu0
    %v195 = vadd.f32 0.0, %v194
    %v196 = vpop.f32.mrb[0].mxu0
    %v197 = vpop.f32.mrb[0].mxu0
    %v198 = vadd.f32 0.0, %v197
    %v199 = vpop.f32.mrb[0].mxu0
    %200 = vmatprep.mubr.bf16.mxu0 0
    %201 = vmatmul.mubr.bf16.gmra.mrb[0].mxu0 %v147
    %v202 = vpop.f32.mrb[0].mxu0
    %v203 = vadd.f32 0.0, %v202
    %v204 = vpop.f32.mrb[0].mxu0
    %v205 = vpop.f32.mrb[0].mxu0
    %v206 = vadd.f32 0.0, %v205
    %v207 = vpop.f32.mrb[0].mxu0
    %208 = vmatprep.mubr.bf16.mxu0 0
    %209 = vmatmul.mubr.bf16.gmra.mrb[0].mxu0 %v150
    %v210 = vpop.f32.mrb[0].mxu0
    %v211 = vadd.f32 0.0, %v210
    %v212 = vpop.f32.mrb[0].mxu0
    %v213 = vpop.f32.mrb[0].mxu0
    %v214 = vadd.f32 0.0, %v213
    %v215 = vpop.f32.mrb[0].mxu0
    %216 = vdwg.mxu0
    %v217 = vadd.f32 %v107, %v187
    %v218 = vadd.f32 %v108, %v190
    %v219 = vadd.f32 %v109, %v195
    %v220 = vadd.f32 %v110, %v198
    %v221 = vadd.f32 %v111, %v203
    %v222 = vadd.f32 %v112, %v206
    %v223 = vadd.f32 %v113, %v211
    %v224 = vadd.f32 %v114, %v214
    %v225 = vmin.f32 %v217, 1.0
    %v226 = vmin.f32 %v218, 1.0
    %v227 = vmin.f32 %v219, 1.0
    %v228 = vmin.f32 %v220, 1.0
    %v229 = vmin.f32 %v221, 1.0
    %v230 = vmin.f32 %v222, 1.0
    %v231 = vmin.f32 %v223, 1.0
    %v232 = vmin.f32 %v224, 1.0
    %v233 = vpack.c.bf16 %v226, %v225
    %v234 = vpack.c.bf16 %v228, %v227
    %v235 = vpack.c.bf16 %v230, %v229
    %v236 = vpack.c.bf16 %v232, %v231
    %237 = vmatprep.subr.bf16.mxu0 0
    %238 = vmatpush1.bf16.msra.mxu0 %v233
    %239 = vmatprep.subr.bf16.mxu0 0
    %240 = vmatpush1.bf16.msra.mxu0 %v234
    %241 = vmatprep.subr.bf16.mxu0 0
    %242 = vmatpush1.bf16.msra.mxu0 %v235
    %243 = vmatprep.subr.bf16.mxu0 0
    %244 = vmatpush1.bf16.msra.mxu0 %v236
    %245 = vmatprep.subr.bf16.mxu0 0
    %246 = vmatpush1.bf16.msra.mxu0 0
    %247 = vmatprep.subr.bf16.mxu0 0
    %248 = vmatpush1.bf16.msra.mxu0 0
    %249 = vmatprep.subr.bf16.mxu0 0
    %250 = vmatpush1.bf16.msra.mxu0 0
    %251 = vmatprep.subr.bf16.mxu0 0
    %252 = vmatpush1.bf16.msra.mxu0 0
    %253 = vmatprep.subr.bf16.mxu0 0
    %254 = vmatpush1.bf16.msra.mxu0 0
    %255 = vmatprep.subr.bf16.mxu0 0
    %256 = vmatpush1.bf16.msra.mxu0 0
    %257 = vmatprep.subr.bf16.mxu0 0
    %258 = vmatpush1.bf16.msra.mxu0 0
    %259 = vmatprep.subr.bf16.mxu0 0
    %260 = vmatpush1.bf16.msra.mxu0 0
    %261 = vmatprep.subr.bf16.mxu0 0
    %262 = vmatpush1.bf16.msra.mxu0 0
    %263 = vmatprep.subr.bf16.mxu0 0
    %264 = vmatpush1.bf16.msra.mxu0 0
    %265 = vmatprep.subr.bf16.mxu0 0
    %266 = vmatpush1.bf16.msra.mxu0 0
    %267 = vmatprep.subr.bf16.mxu0 0
    %268 = vmatpush1.bf16.msra.mxu0 0
    %269 = vmatprep.mubr.bf16.mxu0 0
    %270 = vmatmul.mubr.bf16.gmra.mrb[0].mxu0 %v141
    %v271 = vpop.f32.mrb[0].mxu0
    %v272 = vadd.f32 0.0, %v271
    %v273 = vpop.f32.mrb[0].mxu0
    %v274 = vpop.f32.mrb[0].mxu0
    %v275 = vadd.f32 0.0, %v274
    %v276 = vpop.f32.mrb[0].mxu0
    %277 = vmatprep.mubr.bf16.mxu0 0
    %278 = vmatmul.mubr.bf16.gmra.mrb[0].mxu0 %v144
    %v279 = vpop.f32.mrb[0].mxu0
    %v280 = vadd.f32 0.0, %v279
    %v281 = vpop.f32.mrb[0].mxu0
    %v282 = vpop.f32.mrb[0].mxu0
    %v283 = vadd.f32 0.0, %v282
    %v284 = vpop.f32.mrb[0].mxu0
    %285 = vmatprep.mubr.bf16.mxu0 0
    %286 = vmatmul.mubr.bf16.gmra.mrb[0].mxu0 %v147
    %v287 = vpop.f32.mrb[0].mxu0
    %v288 = vadd.f32 0.0, %v287
    %v289 = vpop.f32.mrb[0].mxu0
    %v290 = vpop.f32.mrb[0].mxu0
    %v291 = vadd.f32 0.0, %v290
    %v292 = vpop.f32.mrb[0].mxu0
    %293 = vmatprep.mubr.bf16.mxu0 0
    %294 = vmatmul.mubr.bf16.gmra.mrb[0].mxu0 %v150
    %v295 = vpop.f32.mrb[0].mxu0
    %v296 = vadd.f32 0.0, %v295
    %v297 = vpop.f32.mrb[0].mxu0
    %v298 = vpop.f32.mrb[0].mxu0
    %v299 = vadd.f32 0.0, %v298
    %v300 = vpop.f32.mrb[0].mxu0
    %301 = vdwg.mxu0
    %v302 = vadd.f32 %v225, %v272
    %v303 = vadd.f32 %v226, %v275
    %v304 = vadd.f32 %v227, %v280
    %v305 = vadd.f32 %v228, %v283
    %v306 = vadd.f32 %v229, %v288
    %v307 = vadd.f32 %v230, %v291
    %v308 = vadd.f32 %v231, %v296
    %v309 = vadd.f32 %v232, %v299
    %v310 = vmin.f32 %v302, 1.0
    %v311 = vmin.f32 %v303, 1.0
    %v312 = vmin.f32 %v304, 1.0
    %v313 = vmin.f32 %v305, 1.0
    %v314 = vmin.f32 %v306, 1.0
    %v315 = vmin.f32 %v307, 1.0
    %v316 = vmin.f32 %v308, 1.0
    %v317 = vmin.f32 %v309, 1.0
    %v318 = vsub.f32 1.0, %v225
    %v319 = vsub.f32 1.0, %v226
    %v320 = vsub.f32 1.0, %v227
    %v321 = vsub.f32 1.0, %v228
    %v322 = vsub.f32 1.0, %v229
    %v323 = vsub.f32 1.0, %v230
    %v324 = vsub.f32 1.0, %v231
    %v325 = vsub.f32 1.0, %v232
    %v326 = vmul.f32 %v310, %v318
    %v327 = vmul.f32 %v311, %v319
    %v328 = vmul.f32 %v312, %v320
    %v329 = vmul.f32 %v313, %v321
    %v330 = vmul.f32 %v314, %v322
    %v331 = vmul.f32 %v315, %v323
    %v332 = vmul.f32 %v316, %v324
    %v333 = vmul.f32 %v317, %v325
    %v334 = vsub.f32 1.0, %v326
    %v335 = vsub.f32 1.0, %v327
    %v336 = vsub.f32 1.0, %v328
    %v337 = vsub.f32 1.0, %v329
    %v338 = vsub.f32 1.0, %v330
    %v339 = vsub.f32 1.0, %v331
    %v340 = vsub.f32 1.0, %v332
    %v341 = vsub.f32 1.0, %v333
    %343 = vset.pattern.permute.xlu0 0
    %344 = vperm.xlu0 %343, %v334
    %v345 = vpop.permute.xlu0 %344
    %348 = vset.pattern.permute.xlu0 0
    %349 = vperm.xlu0 %348, %v335
    %v350 = vpop.permute.xlu0 %349
    %353 = vset.pattern.permute.xlu0 0
    %354 = vperm.xlu0 %353, %v336
    %v355 = vpop.permute.xlu0 %354
    %358 = vset.pattern.permute.xlu0 0
    %359 = vperm.xlu0 %358, %v337
    %v360 = vpop.permute.xlu0 %359
    %363 = vset.pattern.permute.xlu0 0
    %364 = vperm.xlu0 %363, %v338
    %v365 = vpop.permute.xlu0 %364
    %368 = vset.pattern.permute.xlu0 0
    %369 = vperm.xlu0 %368, %v339
    %v370 = vpop.permute.xlu0 %369
    %373 = vset.pattern.permute.xlu0 0
    %374 = vperm.xlu0 %373, %v340
    %v375 = vpop.permute.xlu0 %374
    %378 = vset.pattern.permute.xlu0 0
    %379 = vperm.xlu0 %378, %v341
    %v380 = vpop.permute.xlu0 %379
    %v382 = vmul.f32 %v98, %v345
    %v383 = vmul.f32 %v99, %v350
    %v384 = vmul.f32 %v100, %v355
    %v385 = vmul.f32 %v101, %v360
    %v386 = vmul.f32 %v102, %v365
    %v387 = vmul.f32 %v103, %v370
    %v388 = vmul.f32 %v104, %v375
    %v389 = vmul.f32 %v105, %v380
    %v391 = vlaneseq
    %v392 = vshrl.u32 %v391, 7
    %v393 = vsub.s32 0, %v392
    %v394 = vrot.slane %v106, %v393
    %397 = vset.pattern.permute.xlu0 0
    %398 = vperm.xlu0 %397, %v326
    %v399 = vpop.permute.xlu0 %398
    %402 = vset.pattern.permute.xlu0 0
    %403 = vperm.xlu0 %402, %v327
    %v404 = vpop.permute.xlu0 %403
    %407 = vset.pattern.permute.xlu0 0
    %408 = vperm.xlu0 %407, %v328
    %v409 = vpop.permute.xlu0 %408
    %412 = vset.pattern.permute.xlu0 0
    %413 = vperm.xlu0 %412, %v329
    %v414 = vpop.permute.xlu0 %413
    %417 = vset.pattern.permute.xlu0 0
    %418 = vperm.xlu0 %417, %v330
    %v419 = vpop.permute.xlu0 %418
    %422 = vset.pattern.permute.xlu0 0
    %423 = vperm.xlu0 %422, %v331
    %v424 = vpop.permute.xlu0 %423
    %427 = vset.pattern.permute.xlu0 0
    %428 = vperm.xlu0 %427, %v332
    %v429 = vpop.permute.xlu0 %428
    %432 = vset.pattern.permute.xlu0 0
    %433 = vperm.xlu0 %432, %v333
    %v434 = vpop.permute.xlu0 %433
    %v436 = vmul.f32 %v394, %v399
    %v437 = vmul.f32 %v394, %v404
    %v438 = vmul.f32 %v394, %v409
    %v439 = vmul.f32 %v394, %v414
    %v440 = vmul.f32 %v394, %v419
    %v441 = vmul.f32 %v394, %v424
    %v442 = vmul.f32 %v394, %v429
    %v443 = vmul.f32 %v394, %v434
    %v444 = vadd.f32 %v382, %v436
    %v445 = vadd.f32 %v383, %v437
    %v446 = vadd.f32 %v384, %v438
    %v447 = vadd.f32 %v385, %v439
    %v448 = vadd.f32 %v386, %v440
    %v449 = vadd.f32 %v387, %v441
    %v450 = vadd.f32 %v388, %v442
    %v451 = vadd.f32 %v389, %v443
    %v452 = vpack.c.bf16 %v445, %v444
    %v453 = vpack.c.bf16 %v99, %v98
    %v454 = vpack.c.bf16 %v447, %v446
    %v455 = vpack.c.bf16 %v101, %v100
    %v456 = vpack.c.bf16 %v449, %v448
    %v457 = vpack.c.bf16 %v103, %v102
    %v458 = vpack.c.bf16 %v451, %v450
    %v459 = vpack.c.bf16 %v105, %v104
    %460 = vmatprep.subr.bf16.mxu0 %v453
    %461 = vmatpush1.bf16.msra.mxu0 %v452
    %462 = vmatprep.subr.bf16.mxu0 %v455
    %463 = vmatpush1.bf16.msra.mxu0 %v454
    %464 = vmatprep.subr.bf16.mxu0 %v457
    %465 = vmatpush1.bf16.msra.mxu0 %v456
    %466 = vmatprep.subr.bf16.mxu0 %v459
    %467 = vmatpush1.bf16.msra.mxu0 %v458
    %468 = vmatprep.subr.bf16.mxu0 0
    %469 = vmatpush1.bf16.msra.mxu0 0
    %470 = vmatprep.subr.bf16.mxu0 0
    %471 = vmatpush1.bf16.msra.mxu0 0
    %472 = vmatprep.subr.bf16.mxu0 0
    %473 = vmatpush1.bf16.msra.mxu0 0
    %474 = vmatprep.subr.bf16.mxu0 0
    %475 = vmatpush1.bf16.msra.mxu0 0
    %476 = vmatprep.subr.bf16.mxu0 0
    %477 = vmatpush1.bf16.msra.mxu0 0
    %478 = vmatprep.subr.bf16.mxu0 0
    %479 = vmatpush1.bf16.msra.mxu0 0
    %480 = vmatprep.subr.bf16.mxu0 0
    %481 = vmatpush1.bf16.msra.mxu0 0
    %482 = vmatprep.subr.bf16.mxu0 0
    %483 = vmatpush1.bf16.msra.mxu0 0
    %484 = vmatprep.subr.bf16.mxu0 0
    %485 = vmatpush1.bf16.msra.mxu0 0
    %486 = vmatprep.subr.bf16.mxu0 0
    %487 = vmatpush1.bf16.msra.mxu0 0
    %488 = vmatprep.subr.bf16.mxu0 0
    %489 = vmatpush1.bf16.msra.mxu0 0
    %490 = vmatprep.subr.bf16.mxu0 0
    %491 = vmatpush1.bf16.msra.mxu0 0
    %492 = vmatprep.mubr.bf16.mxu0 0
    %493 = vmatmul.mubr.bf16.gmra.mrb[0].mxu0 %v141
    %v494 = vpop.f32.mrb[0].mxu0
    %v495 = vadd.f32 %v444, %v494
    %v496 = vpop.f32.mrb[0].mxu0
    %v497 = vadd.f32 %v98, %v496
    %v498 = vpop.f32.mrb[0].mxu0
    %v499 = vadd.f32 %v445, %v498
    %v500 = vpop.f32.mrb[0].mxu0
    %v501 = vadd.f32 %v99, %v500
    %502 = vmatprep.mubr.bf16.mxu0 0
    %503 = vmatmul.mubr.bf16.gmra.mrb[0].mxu0 %v144
    %v504 = vpop.f32.mrb[0].mxu0
    %v505 = vadd.f32 %v446, %v504
    %v506 = vpop.f32.mrb[0].mxu0
    %v507 = vadd.f32 %v100, %v506
    %v508 = vpop.f32.mrb[0].mxu0
    %v509 = vadd.f32 %v447, %v508
    %v510 = vpop.f32.mrb[0].mxu0
    %v511 = vadd.f32 %v101, %v510
    %512 = vmatprep.mubr.bf16.mxu0 0
    %513 = vmatmul.mubr.bf16.gmra.mrb[0].mxu0 %v147
    %v514 = vpop.f32.mrb[0].mxu0
    %v515 = vadd.f32 %v448, %v514
    %v516 = vpop.f32.mrb[0].mxu0
    %v517 = vadd.f32 %v102, %v516
    %v518 = vpop.f32.mrb[0].mxu0
    %v519 = vadd.f32 %v449, %v518
    %v520 = vpop.f32.mrb[0].mxu0
    %v521 = vadd.f32 %v103, %v520
    %522 = vmatprep.mubr.bf16.mxu0 0
    %523 = vmatmul.mubr.bf16.gmra.mrb[0].mxu0 %v150
    %v524 = vpop.f32.mrb[0].mxu0
    %v525 = vadd.f32 %v450, %v524
    %v526 = vpop.f32.mrb[0].mxu0
    %v527 = vadd.f32 %v104, %v526
    %v528 = vpop.f32.mrb[0].mxu0
    %v529 = vadd.f32 %v451, %v528
    %v530 = vpop.f32.mrb[0].mxu0
    %v531 = vadd.f32 %v105, %v530
    %532 = vdwg.mxu0
    %v533 = vpack.c.bf16 %v499, %v495
    %v534 = vpack.c.bf16 %v501, %v497
    %v535 = vpack.c.bf16 %v509, %v505
    %v536 = vpack.c.bf16 %v511, %v507
    %v537 = vpack.c.bf16 %v519, %v515
    %v538 = vpack.c.bf16 %v521, %v517
    %v539 = vpack.c.bf16 %v529, %v525
    %v540 = vpack.c.bf16 %v531, %v527
    %v541 = vld [vmem:[#allocation7] sm:$0xff]
    %v542 = vld [vmem:[#allocation7 + $0x8] sm:$0xff]
    %v543 = vld [vmem:[#allocation7 + $0x10] sm:$0xff]
    %v544 = vld [vmem:[#allocation7 + $0x18] sm:$0xff]
    %v545 = vld [vmem:[#allocation7 + $0x20] sm:$0xff]
    %v546 = vld [vmem:[#allocation7 + $0x28] sm:$0xff]
    %v547 = vld [vmem:[#allocation7 + $0x30] sm:$0xff]
    %v548 = vld [vmem:[#allocation7 + $0x38] sm:$0xff]
    %v549 = vld [vmem:[#allocation7 + $0x40] sm:$0xff]
    %v550 = vld [vmem:[#allocation7 + $0x48] sm:$0xff]
    %v551 = vld [vmem:[#allocation7 + $0x50] sm:$0xff]
    %v552 = vld [vmem:[#allocation7 + $0x58] sm:$0xff]
    %v553 = vld [vmem:[#allocation7 + $0x60] sm:$0xff]
    %v554 = vld [vmem:[#allocation7 + $0x68] sm:$0xff]
    %v555 = vld [vmem:[#allocation7 + $0x70] sm:$0xff]
    %v556 = vld [vmem:[#allocation7 + $0x78] sm:$0xff]
    %v557 = vld [vmem:[#allocation7 + $0x80] sm:$0xff]
    %v558 = vld [vmem:[#allocation7 + $0x88] sm:$0xff]
    %v559 = vld [vmem:[#allocation7 + $0x90] sm:$0xff]
    %v560 = vld [vmem:[#allocation7 + $0x98] sm:$0xff]
    %v561 = vld [vmem:[#allocation7 + $0xa0] sm:$0xff]
    %v562 = vld [vmem:[#allocation7 + $0xa8] sm:$0xff]
    %v563 = vld [vmem:[#allocation7 + $0xb0] sm:$0xff]
    %v564 = vld [vmem:[#allocation7 + $0xb8] sm:$0xff]
    %v565 = vld [vmem:[#allocation7 + $0xc0] sm:$0xff]
    %v566 = vld [vmem:[#allocation7 + $0xc8] sm:$0xff]
    %v567 = vld [vmem:[#allocation7 + $0xd0] sm:$0xff]
    %v568 = vld [vmem:[#allocation7 + $0xd8] sm:$0xff]
    %v569 = vld [vmem:[#allocation7 + $0xe0] sm:$0xff]
    %v570 = vld [vmem:[#allocation7 + $0xe8] sm:$0xff]
    %v571 = vld [vmem:[#allocation7 + $0xf0] sm:$0xff]
    %v572 = vld [vmem:[#allocation7 + $0xf8] sm:$0xff]
    %v605 = vunpack.c.l.b16 %v541
    %v606 = vunpack.c.h.b16 %v541
    %v607 = vunpack.c.l.b16 %v542
    %v608 = vunpack.c.h.b16 %v542
    %v609 = vunpack.c.l.b16 %v543
    %v610 = vunpack.c.h.b16 %v543
    %v611 = vunpack.c.l.b16 %v544
    %v612 = vunpack.c.h.b16 %v544
    %v613 = vunpack.c.l.b16 %v545
    %v614 = vunpack.c.h.b16 %v545
    %v615 = vunpack.c.l.b16 %v546
    %v616 = vunpack.c.h.b16 %v546
    %v617 = vunpack.c.l.b16 %v547
    %v618 = vunpack.c.h.b16 %v547
    %v619 = vunpack.c.l.b16 %v548
    %v620 = vunpack.c.h.b16 %v548
    %v621 = vunpack.c.l.b16 %v549
    %v622 = vunpack.c.h.b16 %v549
    %v623 = vunpack.c.l.b16 %v550
    %v624 = vunpack.c.h.b16 %v550
    %v625 = vunpack.c.l.b16 %v551
    %v626 = vunpack.c.h.b16 %v551
    %v627 = vunpack.c.l.b16 %v552
    %v628 = vunpack.c.h.b16 %v552
    %v629 = vunpack.c.l.b16 %v553
    %v630 = vunpack.c.h.b16 %v553
    %v631 = vunpack.c.l.b16 %v554
    %v632 = vunpack.c.h.b16 %v554
    %v633 = vunpack.c.l.b16 %v555
    %v634 = vunpack.c.h.b16 %v555
    %v635 = vunpack.c.l.b16 %v556
    %v636 = vunpack.c.h.b16 %v556
    %v637 = vunpack.c.l.b16 %v557
    %v638 = vunpack.c.h.b16 %v557
    %v639 = vunpack.c.l.b16 %v558
    %v640 = vunpack.c.h.b16 %v558
    %v641 = vunpack.c.l.b16 %v559
    %v642 = vunpack.c.h.b16 %v559
    %v643 = vunpack.c.l.b16 %v560
    %v644 = vunpack.c.h.b16 %v560
    %v645 = vunpack.c.l.b16 %v561
    %v646 = vunpack.c.h.b16 %v561
    %v647 = vunpack.c.l.b16 %v562
    %v648 = vunpack.c.h.b16 %v562
    %v649 = vunpack.c.l.b16 %v563
    %v650 = vunpack.c.h.b16 %v563
    %v651 = vunpack.c.l.b16 %v564
    %v652 = vunpack.c.h.b16 %v564
    %v653 = vunpack.c.l.b16 %v565
    %v654 = vunpack.c.h.b16 %v565
    %v655 = vunpack.c.l.b16 %v566
    %v656 = vunpack.c.h.b16 %v566
    %v657 = vunpack.c.l.b16 %v567
    %v658 = vunpack.c.h.b16 %v567
    %v659 = vunpack.c.l.b16 %v568
    %v660 = vunpack.c.h.b16 %v568
    %v661 = vunpack.c.l.b16 %v569
    %v662 = vunpack.c.h.b16 %v569
    %v663 = vunpack.c.l.b16 %v570
    %v664 = vunpack.c.h.b16 %v570
    %v665 = vunpack.c.l.b16 %v571
    %v666 = vunpack.c.h.b16 %v571
    %v667 = vunpack.c.l.b16 %v572
    %v668 = vunpack.c.h.b16 %v572
    %v669 = vpack.c.b16 %v607, %v605
    %v670 = vpack.c.b16 %v608, %v606
    %v671 = vpack.c.b16 %v611, %v609
    %v672 = vpack.c.b16 %v612, %v610
    %v673 = vpack.c.b16 %v615, %v613
    %v674 = vpack.c.b16 %v616, %v614
    %v675 = vpack.c.b16 %v619, %v617
    %v676 = vpack.c.b16 %v620, %v618
    %v677 = vpack.c.b16 %v623, %v621
    %v678 = vpack.c.b16 %v624, %v622
    %v679 = vpack.c.b16 %v627, %v625
    %v680 = vpack.c.b16 %v628, %v626
    %v681 = vpack.c.b16 %v631, %v629
    %v682 = vpack.c.b16 %v632, %v630
    %v683 = vpack.c.b16 %v635, %v633
    %v684 = vpack.c.b16 %v636, %v634
    %v685 = vpack.c.b16 %v639, %v637
    %v686 = vpack.c.b16 %v640, %v638
    %v687 = vpack.c.b16 %v643, %v641
    %v688 = vpack.c.b16 %v644, %v642
    %v689 = vpack.c.b16 %v647, %v645
    %v690 = vpack.c.b16 %v648, %v646
    %v691 = vpack.c.b16 %v651, %v649
    %v692 = vpack.c.b16 %v652, %v650
    %v693 = vpack.c.b16 %v655, %v653
    %v694 = vpack.c.b16 %v656, %v654
    %v695 = vpack.c.b16 %v659, %v657
    %v696 = vpack.c.b16 %v660, %v658
    %v697 = vpack.c.b16 %v663, %v661
    %v698 = vpack.c.b16 %v664, %v662
    %v699 = vpack.c.b16 %v667, %v665
    %v700 = vpack.c.b16 %v668, %v666
    %733 = vmatprep.subr.bf16.mxu0 %v670
    %734 = vmatpush1.bf16.msra.mxu0 %v669
    %735 = vmatprep.subr.bf16.mxu0 %v672
    %736 = vmatpush1.bf16.msra.mxu0 %v671
    %737 = vmatprep.subr.bf16.mxu0 %v674
    %738 = vmatpush1.bf16.msra.mxu0 %v673
    %739 = vmatprep.subr.bf16.mxu0 %v676
    %740 = vmatpush1.bf16.msra.mxu0 %v675
    %741 = vmatprep.subr.bf16.mxu0 %v678
    %742 = vmatpush1.bf16.msra.mxu0 %v677
    %743 = vmatprep.subr.bf16.mxu0 %v680
    %744 = vmatpush1.bf16.msra.mxu0 %v679
    %745 = vmatprep.subr.bf16.mxu0 %v682
    %746 = vmatpush1.bf16.msra.mxu0 %v681
    %747 = vmatprep.subr.bf16.mxu0 %v684
    %748 = vmatpush1.bf16.msra.mxu0 %v683
    %749 = vmatprep.subr.bf16.mxu0 %v686
    %750 = vmatpush1.bf16.msra.mxu0 %v685
    %751 = vmatprep.subr.bf16.mxu0 %v688
    %752 = vmatpush1.bf16.msra.mxu0 %v687
    %753 = vmatprep.subr.bf16.mxu0 %v690
    %754 = vmatpush1.bf16.msra.mxu0 %v689
    %755 = vmatprep.subr.bf16.mxu0 %v692
    %756 = vmatpush1.bf16.msra.mxu0 %v691
    %757 = vmatprep.subr.bf16.mxu0 %v694
    %758 = vmatpush1.bf16.msra.mxu0 %v693
    %759 = vmatprep.subr.bf16.mxu0 %v696
    %760 = vmatpush1.bf16.msra.mxu0 %v695
    %761 = vmatprep.subr.bf16.mxu0 %v698
    %762 = vmatpush1.bf16.msra.mxu0 %v697
    %763 = vmatprep.subr.bf16.mxu0 %v700
    %764 = vmatpush1.bf16.msra.mxu0 %v699
    %765 = vmatprep.mubr.bf16.mxu0 %v534
    %766 = vmatmul.mubr.bf16.gmra.mrb[0].mxu0 %v533
    %v767 = vpop.f32.mrb[0].mxu0
    %v768 = vadd.f32 0.0, %v767
    %v769 = vpop.f32.mrb[0].mxu0
    %v770 = vadd.f32 0.0, %v769
    %v771 = vpop.f32.mrb[0].mxu0
    %v772 = vadd.f32 0.0, %v771
    %v773 = vpop.f32.mrb[0].mxu0
    %v774 = vadd.f32 0.0, %v773
    %775 = vmatprep.mubr.bf16.mxu0 %v536
    %776 = vmatmul.mubr.bf16.gmra.mrb[0].mxu0 %v535
    %v777 = vpop.f32.mrb[0].mxu0
    %v778 = vadd.f32 0.0, %v777
    %v779 = vpop.f32.mrb[0].mxu0
    %v780 = vadd.f32 0.0, %v779
    %v781 = vpop.f32.mrb[0].mxu0
    %v782 = vadd.f32 0.0, %v781
    %v783 = vpop.f32.mrb[0].mxu0
    %v784 = vadd.f32 0.0, %v783
    %785 = vmatprep.mubr.bf16.mxu0 %v538
    %786 = vmatmul.mubr.bf16.gmra.mrb[0].mxu0 %v537
    %v787 = vpop.f32.mrb[0].mxu0
    %v788 = vadd.f32 0.0, %v787
    %v789 = vpop.f32.mrb[0].mxu0
    %v790 = vadd.f32 0.0, %v789
    %v791 = vpop.f32.mrb[0].mxu0
    %v792 = vadd.f32 0.0, %v791
    %v793 = vpop.f32.mrb[0].mxu0
    %v794 = vadd.f32 0.0, %v793
    %795 = vmatprep.mubr.bf16.mxu0 %v540
    %796 = vmatmul.mubr.bf16.gmra.mrb[0].mxu0 %v539
    %v797 = vpop.f32.mrb[0].mxu0
    %v798 = vadd.f32 0.0, %v797
    %v799 = vpop.f32.mrb[0].mxu0
    %v800 = vadd.f32 0.0, %v799
    %v801 = vpop.f32.mrb[0].mxu0
    %v802 = vadd.f32 0.0, %v801
    %v803 = vpop.f32.mrb[0].mxu0
    %v804 = vadd.f32 0.0, %v803
    %805 = vdwg.mxu0
    %v806 = vld [vmem:[%s6] sm:$0x3]
    %v807 = vld [vmem:[%s7] sm:$0x3]
    %v808 = vadd.f32 %v768, %v772
    %v809 = vadd.f32 %v808, %v778
    %v810 = vadd.f32 %v809, %v782
    %v811 = vadd.f32 %v810, %v788
    %v812 = vadd.f32 %v811, %v792
    %v813 = vadd.f32 %v812, %v798
    %v814 = vadd.f32 %v813, %v802
    %v815 = vrot.slane %v814, 4
    %v816 = vadd.f32 %v814, %v815
    %v817 = vrot.slane %v816, 2
    %v818 = vadd.f32 %v816, %v817
    %v819 = vrot.slane %v818, 1
    %v820 = vadd.f32 %v818, %v819
    %v821 = vadd.f32 %v770, %v774
    %v822 = vadd.f32 %v821, %v780
    %v823 = vadd.f32 %v822, %v784
    %v824 = vadd.f32 %v823, %v790
    %v825 = vadd.f32 %v824, %v794
    %v826 = vadd.f32 %v825, %v800
    %v827 = vadd.f32 %v826, %v804
    %v828 = vrot.slane %v827, 4
    %v829 = vadd.f32 %v827, %v828
    %v830 = vrot.slane %v829, 2
    %v831 = vadd.f32 %v829, %v830
    %v832 = vrot.slane %v831, 1
    %v833 = vadd.f32 %v831, %v832
    %v834 = vmul.f32 %v768, %v768
    %v835 = vmul.f32 %v770, %v770
    %v836 = vmul.f32 %v772, %v772
    %v837 = vmul.f32 %v774, %v774
    %v838 = vmul.f32 %v778, %v778
    %v839 = vmul.f32 %v780, %v780
    %v840 = vmul.f32 %v782, %v782
    %v841 = vmul.f32 %v784, %v784
    %v842 = vmul.f32 %v788, %v788
    %v843 = vmul.f32 %v790, %v790
    %v844 = vmul.f32 %v792, %v792
    %v845 = vmul.f32 %v794, %v794
    %v846 = vmul.f32 %v798, %v798
    %v847 = vmul.f32 %v800, %v800
    %v848 = vmul.f32 %v802, %v802
    %v849 = vmul.f32 %v804, %v804
    %v850 = vadd.f32 %v834, %v836
    %v851 = vadd.f32 %v850, %v838
    %v852 = vadd.f32 %v851, %v840
    %v853 = vadd.f32 %v852, %v842
    %v854 = vadd.f32 %v853, %v844
    %v855 = vadd.f32 %v854, %v846
    %v856 = vadd.f32 %v855, %v848
    %v857 = vrot.slane %v856, 4
    %v858 = vadd.f32 %v856, %v857
    %v859 = vrot.slane %v858, 2
    %v860 = vadd.f32 %v858, %v859
    %v861 = vrot.slane %v860, 1
    %v862 = vadd.f32 %v860, %v861
    %v863 = vadd.f32 %v835, %v837
    %v864 = vadd.f32 %v863, %v839
    %v865 = vadd.f32 %v864, %v841
    %v866 = vadd.f32 %v865, %v843
    %v867 = vadd.f32 %v866, %v845
    %v868 = vadd.f32 %v867, %v847
    %v869 = vadd.f32 %v868, %v849
    %v870 = vrot.slane %v869, 4
    %v871 = vadd.f32 %v869, %v870
    %v872 = vrot.slane %v871, 2
    %v873 = vadd.f32 %v871, %v872
    %v874 = vrot.slane %v873, 1
    %v875 = vadd.f32 %v873, %v874
    %v876 = vmul.f32 %v820, 0.015625
    %v877 = vmul.f32 %v833, 0.015625
    %v878 = vmul.f32 %v862, 0.015625
    %v879 = vmul.f32 %v875, 0.015625
    %v880 = vmul.f32 %v876, %v876
    %v881 = vmul.f32 %v877, %v877
    %v882 = vsub.f32 %v878, %v880
    %v883 = vsub.f32 %v879, %v881
    %v884 = vmax.f32 %v882, 0.0
    %v885 = vmax.f32 %v883, 0.0
    %v886 = vsub.f32 %v768, %v876
    %v887 = vsub.f32 %v770, %v877
    %v888 = vsub.f32 %v772, %v876
    %v889 = vsub.f32 %v774, %v877
    %v890 = vsub.f32 %v778, %v876
    %v891 = vsub.f32 %v780, %v877
    %v892 = vsub.f32 %v782, %v876
    %v893 = vsub.f32 %v784, %v877
    %v894 = vsub.f32 %v788, %v876
    %v895 = vsub.f32 %v790, %v877
    %v896 = vsub.f32 %v792, %v876
    %v897 = vsub.f32 %v794, %v877
    %v898 = vsub.f32 %v798, %v876
    %v899 = vsub.f32 %v800, %v877
    %v900 = vsub.f32 %v802, %v876
    %v901 = vsub.f32 %v804, %v877
    %v902 = vadd.f32 %v884, 1e-05
    %v903 = vadd.f32 %v885, 1e-05
    %v904 = vrsqrt.pop %v902
    %v905 = vrsqrt.pop %v903
    %v906 = vmul.f32 %v886, %v904
    %v907 = vmul.f32 %v887, %v905
    %v908 = vmul.f32 %v888, %v904
    %v909 = vmul.f32 %v889, %v905
    %v910 = vmul.f32 %v890, %v904
    %v911 = vmul.f32 %v891, %v905
    %v912 = vmul.f32 %v892, %v904
    %v913 = vmul.f32 %v893, %v905
    %v914 = vmul.f32 %v894, %v904
    %v915 = vmul.f32 %v895, %v905
    %v916 = vmul.f32 %v896, %v904
    %v917 = vmul.f32 %v897, %v905
    %v918 = vmul.f32 %v898, %v904
    %v919 = vmul.f32 %v899, %v905
    %v920 = vmul.f32 %v900, %v904
    %v921 = vmul.f32 %v901, %v905
    %v923 = vlaneseq
    %v924 = vshrl.u32 %v923, 7
    %v925 = vsub.s32 0, %v924
    %v926 = vrot.slane %v806, %v925
    %v927 = vlaneseq
    %v928 = vshrl.u32 %v927, 7
    %v929 = vsub.s32 1, %v928
    %v930 = vrot.slane %v806, %v929
    %v933 = vmul.f32 %v906, %v926
    %v934 = vmul.f32 %v907, %v930
    %v935 = vmul.f32 %v908, %v926
    %v936 = vmul.f32 %v909, %v930
    %v937 = vmul.f32 %v910, %v926
    %v938 = vmul.f32 %v911, %v930
    %v939 = vmul.f32 %v912, %v926
    %v940 = vmul.f32 %v913, %v930
    %v941 = vmul.f32 %v914, %v926
    %v942 = vmul.f32 %v915, %v930
    %v943 = vmul.f32 %v916, %v926
    %v944 = vmul.f32 %v917, %v930
    %v945 = vmul.f32 %v918, %v926
    %v946 = vmul.f32 %v919, %v930
    %v947 = vmul.f32 %v920, %v926
    %v948 = vmul.f32 %v921, %v930
    %v950 = vlaneseq
    %v951 = vshrl.u32 %v950, 7
    %v952 = vsub.s32 0, %v951
    %v953 = vrot.slane %v807, %v952
    %v954 = vlaneseq
    %v955 = vshrl.u32 %v954, 7
    %v956 = vsub.s32 1, %v955
    %v957 = vrot.slane %v807, %v956
    %v960 = vadd.f32 %v933, %v953
    %v961 = vadd.f32 %v934, %v957
    %v962 = vadd.f32 %v935, %v953
    %v963 = vadd.f32 %v936, %v957
    %v964 = vadd.f32 %v937, %v953
    %v965 = vadd.f32 %v938, %v957
    %v966 = vadd.f32 %v939, %v953
    %v967 = vadd.f32 %v940, %v957
    %v968 = vadd.f32 %v941, %v953
    %v969 = vadd.f32 %v942, %v957
    %v970 = vadd.f32 %v943, %v953
    %v971 = vadd.f32 %v944, %v957
    %v972 = vadd.f32 %v945, %v953
    %v973 = vadd.f32 %v946, %v957
    %v974 = vadd.f32 %v947, %v953
    %v975 = vadd.f32 %v948, %v957
    %v976 = vmax.f32 %v960, 0.0
    %v977 = vmax.f32 %v961, 0.0
    %v978 = vmax.f32 %v962, 0.0
    %v979 = vmax.f32 %v963, 0.0
    %v980 = vmax.f32 %v964, 0.0
    %v981 = vmax.f32 %v965, 0.0
    %v982 = vmax.f32 %v966, 0.0
    %v983 = vmax.f32 %v967, 0.0
    %v984 = vmax.f32 %v968, 0.0
    %v985 = vmax.f32 %v969, 0.0
    %v986 = vmax.f32 %v970, 0.0
    %v987 = vmax.f32 %v971, 0.0
    %v988 = vmax.f32 %v972, 0.0
    %v989 = vmax.f32 %v973, 0.0
    %v990 = vmax.f32 %v974, 0.0
    %v991 = vmax.f32 %v975, 0.0
    %v992 = vpack.c.bf16 %v978, %v976
    %v993 = vpack.c.bf16 %v979, %v977
    %v994 = vpack.c.bf16 %v982, %v980
    %v995 = vpack.c.bf16 %v983, %v981
    %v996 = vpack.c.bf16 %v986, %v984
    %v997 = vpack.c.bf16 %v987, %v985
    %v998 = vpack.c.bf16 %v990, %v988
    %v999 = vpack.c.bf16 %v991, %v989
    %v1000 = vld [vmem:[#allocation8] sm:$0xff]
    %v1001 = vld [vmem:[#allocation8 + $0x8] sm:$0xff]
    %v1002 = vld [vmem:[#allocation8 + $0x10] sm:$0xff]
    %v1003 = vld [vmem:[#allocation8 + $0x18] sm:$0xff]
    %v1004 = vld [vmem:[#allocation8 + $0x20] sm:$0xff]
    %v1005 = vld [vmem:[#allocation8 + $0x28] sm:$0xff]
    %v1006 = vld [vmem:[#allocation8 + $0x30] sm:$0xff]
    %v1007 = vld [vmem:[#allocation8 + $0x38] sm:$0xff]
    %v1008 = vld [vmem:[#allocation8 + $0x40] sm:$0xff]
    %v1009 = vld [vmem:[#allocation8 + $0x48] sm:$0xff]
    %v1010 = vld [vmem:[#allocation8 + $0x50] sm:$0xff]
    %v1011 = vld [vmem:[#allocation8 + $0x58] sm:$0xff]
    %v1012 = vld [vmem:[#allocation8 + $0x60] sm:$0xff]
    %v1013 = vld [vmem:[#allocation8 + $0x68] sm:$0xff]
    %v1014 = vld [vmem:[#allocation8 + $0x70] sm:$0xff]
    %v1015 = vld [vmem:[#allocation8 + $0x78] sm:$0xff]
    %v1016 = vld [vmem:[#allocation8 + $0x80] sm:$0xff]
    %v1017 = vld [vmem:[#allocation8 + $0x88] sm:$0xff]
    %v1018 = vld [vmem:[#allocation8 + $0x90] sm:$0xff]
    %v1019 = vld [vmem:[#allocation8 + $0x98] sm:$0xff]
    %v1020 = vld [vmem:[#allocation8 + $0xa0] sm:$0xff]
    %v1021 = vld [vmem:[#allocation8 + $0xa8] sm:$0xff]
    %v1022 = vld [vmem:[#allocation8 + $0xb0] sm:$0xff]
    %v1023 = vld [vmem:[#allocation8 + $0xb8] sm:$0xff]
    %v1024 = vld [vmem:[#allocation8 + $0xc0] sm:$0xff]
    %v1025 = vld [vmem:[#allocation8 + $0xc8] sm:$0xff]
    %v1026 = vld [vmem:[#allocation8 + $0xd0] sm:$0xff]
    %v1027 = vld [vmem:[#allocation8 + $0xd8] sm:$0xff]
    %v1028 = vld [vmem:[#allocation8 + $0xe0] sm:$0xff]
    %v1029 = vld [vmem:[#allocation8 + $0xe8] sm:$0xff]
    %v1030 = vld [vmem:[#allocation8 + $0xf0] sm:$0xff]
    %v1031 = vld [vmem:[#allocation8 + $0xf8] sm:$0xff]
    %v1064 = vunpack.c.l.b16 %v1000
    %v1065 = vunpack.c.h.b16 %v1000
    %v1066 = vunpack.c.l.b16 %v1001
    %v1067 = vunpack.c.h.b16 %v1001
    %v1068 = vunpack.c.l.b16 %v1002
    %v1069 = vunpack.c.h.b16 %v1002
    %v1070 = vunpack.c.l.b16 %v1003
    %v1071 = vunpack.c.h.b16 %v1003
    %v1072 = vunpack.c.l.b16 %v1004
    %v1073 = vunpack.c.h.b16 %v1004
    %v1074 = vunpack.c.l.b16 %v1005
    %v1075 = vunpack.c.h.b16 %v1005
    %v1076 = vunpack.c.l.b16 %v1006
    %v1077 = vunpack.c.h.b16 %v1006
    %v1078 = vunpack.c.l.b16 %v1007
    %v1079 = vunpack.c.h.b16 %v1007
    %v1080 = vunpack.c.l.b16 %v1008
    %v1081 = vunpack.c.h.b16 %v1008
    %v1082 = vunpack.c.l.b16 %v1009
    %v1083 = vunpack.c.h.b16 %v1009
    %v1084 = vunpack.c.l.b16 %v1010
    %v1085 = vunpack.c.h.b16 %v1010
    %v1086 = vunpack.c.l.b16 %v1011
    %v1087 = vunpack.c.h.b16 %v1011
    %v1088 = vunpack.c.l.b16 %v1012
    %v1089 = vunpack.c.h.b16 %v1012
    %v1090 = vunpack.c.l.b16 %v1013
    %v1091 = vunpack.c.h.b16 %v1013
    %v1092 = vunpack.c.l.b16 %v1014
    %v1093 = vunpack.c.h.b16 %v1014
    %v1094 = vunpack.c.l.b16 %v1015
    %v1095 = vunpack.c.h.b16 %v1015
    %v1096 = vunpack.c.l.b16 %v1016
    %v1097 = vunpack.c.h.b16 %v1016
    %v1098 = vunpack.c.l.b16 %v1017
    %v1099 = vunpack.c.h.b16 %v1017
    %v1100 = vunpack.c.l.b16 %v1018
    %v1101 = vunpack.c.h.b16 %v1018
    %v1102 = vunpack.c.l.b16 %v1019
    %v1103 = vunpack.c.h.b16 %v1019
    %v1104 = vunpack.c.l.b16 %v1020
    %v1105 = vunpack.c.h.b16 %v1020
    %v1106 = vunpack.c.l.b16 %v1021
    %v1107 = vunpack.c.h.b16 %v1021
    %v1108 = vunpack.c.l.b16 %v1022
    %v1109 = vunpack.c.h.b16 %v1022
    %v1110 = vunpack.c.l.b16 %v1023
    %v1111 = vunpack.c.h.b16 %v1023
    %v1112 = vunpack.c.l.b16 %v1024
    %v1113 = vunpack.c.h.b16 %v1024
    %v1114 = vunpack.c.l.b16 %v1025
    %v1115 = vunpack.c.h.b16 %v1025
    %v1116 = vunpack.c.l.b16 %v1026
    %v1117 = vunpack.c.h.b16 %v1026
    %v1118 = vunpack.c.l.b16 %v1027
    %v1119 = vunpack.c.h.b16 %v1027
    %v1120 = vunpack.c.l.b16 %v1028
    %v1121 = vunpack.c.h.b16 %v1028
    %v1122 = vunpack.c.l.b16 %v1029
    %v1123 = vunpack.c.h.b16 %v1029
    %v1124 = vunpack.c.l.b16 %v1030
    %v1125 = vunpack.c.h.b16 %v1030
    %v1126 = vunpack.c.l.b16 %v1031
    %v1127 = vunpack.c.h.b16 %v1031
    %v1128 = vpack.c.b16 %v1066, %v1064
    %v1129 = vpack.c.b16 %v1067, %v1065
    %v1130 = vpack.c.b16 %v1070, %v1068
    %v1131 = vpack.c.b16 %v1071, %v1069
    %v1132 = vpack.c.b16 %v1074, %v1072
    %v1133 = vpack.c.b16 %v1075, %v1073
    %v1134 = vpack.c.b16 %v1078, %v1076
    %v1135 = vpack.c.b16 %v1079, %v1077
    %v1136 = vpack.c.b16 %v1082, %v1080
    %v1137 = vpack.c.b16 %v1083, %v1081
    %v1138 = vpack.c.b16 %v1086, %v1084
    %v1139 = vpack.c.b16 %v1087, %v1085
    %v1140 = vpack.c.b16 %v1090, %v1088
    %v1141 = vpack.c.b16 %v1091, %v1089
    %v1142 = vpack.c.b16 %v1094, %v1092
    %v1143 = vpack.c.b16 %v1095, %v1093
    %v1144 = vpack.c.b16 %v1098, %v1096
    %v1145 = vpack.c.b16 %v1099, %v1097
    %v1146 = vpack.c.b16 %v1102, %v1100
    %v1147 = vpack.c.b16 %v1103, %v1101
    %v1148 = vpack.c.b16 %v1106, %v1104
    %v1149 = vpack.c.b16 %v1107, %v1105
    %v1150 = vpack.c.b16 %v1110, %v1108
    %v1151 = vpack.c.b16 %v1111, %v1109
    %v1152 = vpack.c.b16 %v1114, %v1112
    %v1153 = vpack.c.b16 %v1115, %v1113
    %v1154 = vpack.c.b16 %v1118, %v1116
    %v1155 = vpack.c.b16 %v1119, %v1117
    %v1156 = vpack.c.b16 %v1122, %v1120
    %v1157 = vpack.c.b16 %v1123, %v1121
    %v1158 = vpack.c.b16 %v1126, %v1124
    %v1159 = vpack.c.b16 %v1127, %v1125
    %1192 = vmatprep.subr.bf16.mxu0 %v1129
    %1193 = vmatpush1.bf16.msra.mxu0 %v1128
    %1194 = vmatprep.subr.bf16.mxu0 %v1131
    %1195 = vmatpush1.bf16.msra.mxu0 %v1130
    %1196 = vmatprep.subr.bf16.mxu0 %v1133
    %1197 = vmatpush1.bf16.msra.mxu0 %v1132
    %1198 = vmatprep.subr.bf16.mxu0 %v1135
    %1199 = vmatpush1.bf16.msra.mxu0 %v1134
    %1200 = vmatprep.subr.bf16.mxu0 %v1137
    %1201 = vmatpush1.bf16.msra.mxu0 %v1136
    %1202 = vmatprep.subr.bf16.mxu0 %v1139
    %1203 = vmatpush1.bf16.msra.mxu0 %v1138
    %1204 = vmatprep.subr.bf16.mxu0 %v1141
    %1205 = vmatpush1.bf16.msra.mxu0 %v1140
    %1206 = vmatprep.subr.bf16.mxu0 %v1143
    %1207 = vmatpush1.bf16.msra.mxu0 %v1142
    %1208 = vmatprep.subr.bf16.mxu0 %v1145
    %1209 = vmatpush1.bf16.msra.mxu0 %v1144
    %1210 = vmatprep.subr.bf16.mxu0 %v1147
    %1211 = vmatpush1.bf16.msra.mxu0 %v1146
    %1212 = vmatprep.subr.bf16.mxu0 %v1149
    %1213 = vmatpush1.bf16.msra.mxu0 %v1148
    %1214 = vmatprep.subr.bf16.mxu0 %v1151
    %1215 = vmatpush1.bf16.msra.mxu0 %v1150
    %1216 = vmatprep.subr.bf16.mxu0 %v1153
    %1217 = vmatpush1.bf16.msra.mxu0 %v1152
    %1218 = vmatprep.subr.bf16.mxu0 %v1155
    %1219 = vmatpush1.bf16.msra.mxu0 %v1154
    %1220 = vmatprep.subr.bf16.mxu0 %v1157
    %1221 = vmatpush1.bf16.msra.mxu0 %v1156
    %1222 = vmatprep.subr.bf16.mxu0 %v1159
    %1223 = vmatpush1.bf16.msra.mxu0 %v1158
    %1224 = vmatprep.mubr.bf16.mxu0 %v993
    %1225 = vmatmul.mubr.bf16.gmra.mrb[0].mxu0 %v992
    %v1226 = vpop.f32.mrb[0].mxu0
    %v1227 = vadd.f32 0.0, %v1226
    %v1228 = vpop.f32.mrb[0].mxu0
    %v1229 = vadd.f32 0.0, %v1228
    %v1230 = vpop.f32.mrb[0].mxu0
    %v1231 = vadd.f32 0.0, %v1230
    %v1232 = vpop.f32.mrb[0].mxu0
    %v1233 = vadd.f32 0.0, %v1232
    %1234 = vmatprep.mubr.bf16.mxu0 %v995
    %1235 = vmatmul.mubr.bf16.gmra.mrb[0].mxu0 %v994
    %v1236 = vpop.f32.mrb[0].mxu0
    %v1237 = vadd.f32 0.0, %v1236
    %v1238 = vpop.f32.mrb[0].mxu0
    %v1239 = vadd.f32 0.0, %v1238
    %v1240 = vpop.f32.mrb[0].mxu0
    %v1241 = vadd.f32 0.0, %v1240
    %v1242 = vpop.f32.mrb[0].mxu0
    %v1243 = vadd.f32 0.0, %v1242
    %1244 = vmatprep.mubr.bf16.mxu0 %v997
    %1245 = vmatmul.mubr.bf16.gmra.mrb[0].mxu0 %v996
    %v1246 = vpop.f32.mrb[0].mxu0
    %v1247 = vadd.f32 0.0, %v1246
    %v1248 = vpop.f32.mrb[0].mxu0
    %v1249 = vadd.f32 0.0, %v1248
    %v1250 = vpop.f32.mrb[0].mxu0
    %v1251 = vadd.f32 0.0, %v1250
    %v1252 = vpop.f32.mrb[0].mxu0
    %v1253 = vadd.f32 0.0, %v1252
    %1254 = vmatprep.mubr.bf16.mxu0 %v999
    %1255 = vmatmul.mubr.bf16.gmra.mrb[0].mxu0 %v998
    %v1256 = vpop.f32.mrb[0].mxu0
    %v1257 = vadd.f32 0.0, %v1256
    %v1258 = vpop.f32.mrb[0].mxu0
    %v1259 = vadd.f32 0.0, %v1258
    %v1260 = vpop.f32.mrb[0].mxu0
    %v1261 = vadd.f32 0.0, %v1260
    %v1262 = vpop.f32.mrb[0].mxu0
    %v1263 = vadd.f32 0.0, %v1262
    %1264 = vdwg.mxu0
    %v1265 = vld [vmem:[%s8] sm:$0x3]
    %v1266 = vld [vmem:[%s9] sm:$0x3]
    %v1267 = vadd.f32 %v1227, %v1231
    %v1268 = vadd.f32 %v1267, %v1237
    %v1269 = vadd.f32 %v1268, %v1241
    %v1270 = vadd.f32 %v1269, %v1247
    %v1271 = vadd.f32 %v1270, %v1251
    %v1272 = vadd.f32 %v1271, %v1257
    %v1273 = vadd.f32 %v1272, %v1261
    %v1274 = vrot.slane %v1273, 4
    %v1275 = vadd.f32 %v1273, %v1274
    %v1276 = vrot.slane %v1275, 2
    %v1277 = vadd.f32 %v1275, %v1276
    %v1278 = vrot.slane %v1277, 1
    %v1279 = vadd.f32 %v1277, %v1278
    %v1280 = vadd.f32 %v1229, %v1233
    %v1281 = vadd.f32 %v1280, %v1239
    %v1282 = vadd.f32 %v1281, %v1243
    %v1283 = vadd.f32 %v1282, %v1249
    %v1284 = vadd.f32 %v1283, %v1253
    %v1285 = vadd.f32 %v1284, %v1259
    %v1286 = vadd.f32 %v1285, %v1263
    %v1287 = vrot.slane %v1286, 4
    %v1288 = vadd.f32 %v1286, %v1287
    %v1289 = vrot.slane %v1288, 2
    %v1290 = vadd.f32 %v1288, %v1289
    %v1291 = vrot.slane %v1290, 1
    %v1292 = vadd.f32 %v1290, %v1291
    %v1293 = vmul.f32 %v1227, %v1227
    %v1294 = vmul.f32 %v1229, %v1229
    %v1295 = vmul.f32 %v1231, %v1231
    %v1296 = vmul.f32 %v1233, %v1233
    %v1297 = vmul.f32 %v1237, %v1237
    %v1298 = vmul.f32 %v1239, %v1239
    %v1299 = vmul.f32 %v1241, %v1241
    %v1300 = vmul.f32 %v1243, %v1243
    %v1301 = vmul.f32 %v1247, %v1247
    %v1302 = vmul.f32 %v1249, %v1249
    %v1303 = vmul.f32 %v1251, %v1251
    %v1304 = vmul.f32 %v1253, %v1253
    %v1305 = vmul.f32 %v1257, %v1257
    %v1306 = vmul.f32 %v1259, %v1259
    %v1307 = vmul.f32 %v1261, %v1261
    %v1308 = vmul.f32 %v1263, %v1263
    %v1309 = vadd.f32 %v1293, %v1295
    %v1310 = vadd.f32 %v1309, %v1297
    %v1311 = vadd.f32 %v1310, %v1299
    %v1312 = vadd.f32 %v1311, %v1301
    %v1313 = vadd.f32 %v1312, %v1303
    %v1314 = vadd.f32 %v1313, %v1305
    %v1315 = vadd.f32 %v1314, %v1307
    %v1316 = vrot.slane %v1315, 4
    %v1317 = vadd.f32 %v1315, %v1316
    %v1318 = vrot.slane %v1317, 2
    %v1319 = vadd.f32 %v1317, %v1318
    %v1320 = vrot.slane %v1319, 1
    %v1321 = vadd.f32 %v1319, %v1320
    %v1322 = vadd.f32 %v1294, %v1296
    %v1323 = vadd.f32 %v1322, %v1298
    %v1324 = vadd.f32 %v1323, %v1300
    %v1325 = vadd.f32 %v1324, %v1302
    %v1326 = vadd.f32 %v1325, %v1304
    %v1327 = vadd.f32 %v1326, %v1306
    %v1328 = vadd.f32 %v1327, %v1308
    %v1329 = vrot.slane %v1328, 4
    %v1330 = vadd.f32 %v1328, %v1329
    %v1331 = vrot.slane %v1330, 2
    %v1332 = vadd.f32 %v1330, %v1331
    %v1333 = vrot.slane %v1332, 1
    %v1334 = vadd.f32 %v1332, %v1333
    %v1335 = vmul.f32 %v1279, 0.015625
    %v1336 = vmul.f32 %v1292, 0.015625
    %v1337 = vmul.f32 %v1321, 0.015625
    %v1338 = vmul.f32 %v1334, 0.015625
    %v1339 = vmul.f32 %v1335, %v1335
    %v1340 = vmul.f32 %v1336, %v1336
    %v1341 = vsub.f32 %v1337, %v1339
    %v1342 = vsub.f32 %v1338, %v1340
    %v1343 = vmax.f32 %v1341, 0.0
    %v1344 = vmax.f32 %v1342, 0.0
    %v1345 = vsub.f32 %v1227, %v1335
    %v1346 = vsub.f32 %v1229, %v1336
    %v1347 = vsub.f32 %v1231, %v1335
    %v1348 = vsub.f32 %v1233, %v1336
    %v1349 = vsub.f32 %v1237, %v1335
    %v1350 = vsub.f32 %v1239, %v1336
    %v1351 = vsub.f32 %v1241, %v1335
    %v1352 = vsub.f32 %v1243, %v1336
    %v1353 = vsub.f32 %v1247, %v1335
    %v1354 = vsub.f32 %v1249, %v1336
    %v1355 = vsub.f32 %v1251, %v1335
    %v1356 = vsub.f32 %v1253, %v1336
    %v1357 = vsub.f32 %v1257, %v1335
    %v1358 = vsub.f32 %v1259, %v1336
    %v1359 = vsub.f32 %v1261, %v1335
    %v1360 = vsub.f32 %v1263, %v1336
    %v1361 = vadd.f32 %v1343, 1e-05
    %v1362 = vadd.f32 %v1344, 1e-05
    %v1363 = vrsqrt.pop %v1361
    %v1364 = vrsqrt.pop %v1362
    %v1365 = vmul.f32 %v1345, %v1363
    %v1366 = vmul.f32 %v1346, %v1364
    %v1367 = vmul.f32 %v1347, %v1363
    %v1368 = vmul.f32 %v1348, %v1364
    %v1369 = vmul.f32 %v1349, %v1363
    %v1370 = vmul.f32 %v1350, %v1364
    %v1371 = vmul.f32 %v1351, %v1363
    %v1372 = vmul.f32 %v1352, %v1364
    %v1373 = vmul.f32 %v1353, %v1363
    %v1374 = vmul.f32 %v1354, %v1364
    %v1375 = vmul.f32 %v1355, %v1363
    %v1376 = vmul.f32 %v1356, %v1364
    %v1377 = vmul.f32 %v1357, %v1363
    %v1378 = vmul.f32 %v1358, %v1364
    %v1379 = vmul.f32 %v1359, %v1363
    %v1380 = vmul.f32 %v1360, %v1364
    %v1382 = vlaneseq
    %v1383 = vshrl.u32 %v1382, 7
    %v1384 = vsub.s32 0, %v1383
    %v1385 = vrot.slane %v1265, %v1384
    %v1386 = vlaneseq
    %v1387 = vshrl.u32 %v1386, 7
    %v1388 = vsub.s32 1, %v1387
    %v1389 = vrot.slane %v1265, %v1388
    %v1392 = vmul.f32 %v1365, %v1385
    %v1393 = vmul.f32 %v1366, %v1389
    %v1394 = vmul.f32 %v1367, %v1385
    %v1395 = vmul.f32 %v1368, %v1389
    %v1396 = vmul.f32 %v1369, %v1385
    %v1397 = vmul.f32 %v1370, %v1389
    %v1398 = vmul.f32 %v1371, %v1385
    %v1399 = vmul.f32 %v1372, %v1389
    %v1400 = vmul.f32 %v1373, %v1385
    %v1401 = vmul.f32 %v1374, %v1389
    %v1402 = vmul.f32 %v1375, %v1385
    %v1403 = vmul.f32 %v1376, %v1389
    %v1404 = vmul.f32 %v1377, %v1385
    %v1405 = vmul.f32 %v1378, %v1389
    %v1406 = vmul.f32 %v1379, %v1385
    %v1407 = vmul.f32 %v1380, %v1389
    %v1409 = vlaneseq
    %v1410 = vshrl.u32 %v1409, 7
    %v1411 = vsub.s32 0, %v1410
    %v1412 = vrot.slane %v1266, %v1411
    %v1413 = vlaneseq
    %v1414 = vshrl.u32 %v1413, 7
    %v1415 = vsub.s32 1, %v1414
    %v1416 = vrot.slane %v1266, %v1415
    %v1419 = vadd.f32 %v1392, %v1412
    %v1420 = vadd.f32 %v1393, %v1416
    %v1421 = vadd.f32 %v1394, %v1412
    %v1422 = vadd.f32 %v1395, %v1416
    %v1423 = vadd.f32 %v1396, %v1412
    %v1424 = vadd.f32 %v1397, %v1416
    %v1425 = vadd.f32 %v1398, %v1412
    %v1426 = vadd.f32 %v1399, %v1416
    %v1427 = vadd.f32 %v1400, %v1412
    %v1428 = vadd.f32 %v1401, %v1416
    %v1429 = vadd.f32 %v1402, %v1412
    %v1430 = vadd.f32 %v1403, %v1416
    %v1431 = vadd.f32 %v1404, %v1412
    %v1432 = vadd.f32 %v1405, %v1416
    %v1433 = vadd.f32 %v1406, %v1412
    %v1434 = vadd.f32 %v1407, %v1416
    %v1435 = vmax.f32 %v1419, 0.0
    %v1436 = vmax.f32 %v1420, 0.0
    %v1437 = vmax.f32 %v1421, 0.0
    %v1438 = vmax.f32 %v1422, 0.0
    %v1439 = vmax.f32 %v1423, 0.0
    %v1440 = vmax.f32 %v1424, 0.0
    %v1441 = vmax.f32 %v1425, 0.0
    %v1442 = vmax.f32 %v1426, 0.0
    %v1443 = vmax.f32 %v1427, 0.0
    %v1444 = vmax.f32 %v1428, 0.0
    %v1445 = vmax.f32 %v1429, 0.0
    %v1446 = vmax.f32 %v1430, 0.0
    %v1447 = vmax.f32 %v1431, 0.0
    %v1448 = vmax.f32 %v1432, 0.0
    %v1449 = vmax.f32 %v1433, 0.0
    %v1450 = vmax.f32 %v1434, 0.0
    %v1451 = vpack.c.bf16 %v1437, %v1435
    %v1452 = vpack.c.bf16 %v1438, %v1436
    %v1453 = vpack.c.bf16 %v1441, %v1439
    %v1454 = vpack.c.bf16 %v1442, %v1440
    %v1455 = vpack.c.bf16 %v1445, %v1443
    %v1456 = vpack.c.bf16 %v1446, %v1444
    %v1457 = vpack.c.bf16 %v1449, %v1447
    %v1458 = vpack.c.bf16 %v1450, %v1448
    %1459 = vmatprep.subr.bf16.mxu0 %v1452
    %1460 = vmatpush1.bf16.msra.mxu0 %v1451
    %1461 = vmatprep.subr.bf16.mxu0 %v1454
    %1462 = vmatpush1.bf16.msra.mxu0 %v1453
    %1463 = vmatprep.subr.bf16.mxu0 %v1456
    %1464 = vmatpush1.bf16.msra.mxu0 %v1455
    %1465 = vmatprep.subr.bf16.mxu0 %v1458
    %1466 = vmatpush1.bf16.msra.mxu0 %v1457
    %1467 = vmatprep.subr.bf16.mxu0 0
    %1468 = vmatpush1.bf16.msra.mxu0 0
    %1469 = vmatprep.subr.bf16.mxu0 0
    %1470 = vmatpush1.bf16.msra.mxu0 0
    %1471 = vmatprep.subr.bf16.mxu0 0
    %1472 = vmatpush1.bf16.msra.mxu0 0
    %1473 = vmatprep.subr.bf16.mxu0 0
    %1474 = vmatpush1.bf16.msra.mxu0 0
    %1475 = vmatprep.subr.bf16.mxu0 0
    %1476 = vmatpush1.bf16.msra.mxu0 0
    %1477 = vmatprep.subr.bf16.mxu0 0
    %1478 = vmatpush1.bf16.msra.mxu0 0
    %1479 = vmatprep.subr.bf16.mxu0 0
    %1480 = vmatpush1.bf16.msra.mxu0 0
    %1481 = vmatprep.subr.bf16.mxu0 0
    %1482 = vmatpush1.bf16.msra.mxu0 0
    %1483 = vmatprep.subr.bf16.mxu0 0
    %1484 = vmatpush1.bf16.msra.mxu0 0
    %1485 = vmatprep.subr.bf16.mxu0 0
    %1486 = vmatpush1.bf16.msra.mxu0 0
    %1487 = vmatprep.subr.bf16.mxu0 0
    %1488 = vmatpush1.bf16.msra.mxu0 0
    %1489 = vmatprep.subr.bf16.mxu0 0
    %1490 = vmatpush1.bf16.msra.mxu0 0
    %1491 = vmatprep.mubr.bf16.mxu0 0
    %1492 = vmatmul.mubr.bf16.gmra.mrb[0].mxu0 %v141
    %v1493 = vpop.f32.mrb[0].mxu0
    %v1494 = vadd.f32 %v1435, %v1493
    %v1495 = vpop.f32.mrb[0].mxu0
    %v1496 = vadd.f32 %v1436, %v1495
    %v1497 = vpop.f32.mrb[0].mxu0
    %v1498 = vadd.f32 %v1437, %v1497
    %v1499 = vpop.f32.mrb[0].mxu0
    %v1500 = vadd.f32 %v1438, %v1499
    %1501 = vmatprep.mubr.bf16.mxu0 0
    %1502 = vmatmul.mubr.bf16.gmra.mrb[0].mxu0 %v144
    %v1503 = vpop.f32.mrb[0].mxu0
    %v1504 = vadd.f32 %v1439, %v1503
    %v1505 = vpop.f32.mrb[0].mxu0
    %v1506 = vadd.f32 %v1440, %v1505
    %v1507 = vpop.f32.mrb[0].mxu0
    %v1508 = vadd.f32 %v1441, %v1507
    %v1509 = vpop.f32.mrb[0].mxu0
    %v1510 = vadd.f32 %v1442, %v1509
    %1511 = vmatprep.mubr.bf16.mxu0 0
    %1512 = vmatmul.mubr.bf16.gmra.mrb[0].mxu0 %v147
    %v1513 = vpop.f32.mrb[0].mxu0
    %v1514 = vadd.f32 %v1443, %v1513
    %v1515 = vpop.f32.mrb[0].mxu0
    %v1516 = vadd.f32 %v1444, %v1515
    %v1517 = vpop.f32.mrb[0].mxu0
    %v1518 = vadd.f32 %v1445, %v1517
    %v1519 = vpop.f32.mrb[0].mxu0
    %v1520 = vadd.f32 %v1446, %v1519
    %1521 = vmatprep.mubr.bf16.mxu0 0
    %1522 = vmatmul.mubr.bf16.gmra.mrb[0].mxu0 %v150
    %v1523 = vpop.f32.mrb[0].mxu0
    %v1524 = vadd.f32 %v1447, %v1523
    %v1525 = vpop.f32.mrb[0].mxu0
    %v1526 = vadd.f32 %v1448, %v1525
    %v1527 = vpop.f32.mrb[0].mxu0
    %v1528 = vadd.f32 %v1449, %v1527
    %v1529 = vpop.f32.mrb[0].mxu0
    %v1530 = vadd.f32 %v1450, %v1529
    %1531 = vdwg.mxu0
    %v1532 = vpack.c.bf16 %v1498, %v1494
    %v1533 = vpack.c.bf16 %v1500, %v1496
    %v1534 = vpack.c.bf16 %v1508, %v1504
    %v1535 = vpack.c.bf16 %v1510, %v1506
    %v1536 = vpack.c.bf16 %v1518, %v1514
    %v1537 = vpack.c.bf16 %v1520, %v1516
    %v1538 = vpack.c.bf16 %v1528, %v1524
    %v1539 = vpack.c.bf16 %v1530, %v1526
    %s1540 = scalar_lea.vmem [#allocation7], 256
    %v1541 = vld [vmem:[%s1540] sm:$0xff]
    %v1542 = vld [vmem:[%s1540 + $0x8] sm:$0xff]
    %v1543 = vld [vmem:[%s1540 + $0x10] sm:$0xff]
    %v1544 = vld [vmem:[%s1540 + $0x18] sm:$0xff]
    %v1545 = vld [vmem:[%s1540 + $0x20] sm:$0xff]
    %v1546 = vld [vmem:[%s1540 + $0x28] sm:$0xff]
    %v1547 = vld [vmem:[%s1540 + $0x30] sm:$0xff]
    %v1548 = vld [vmem:[%s1540 + $0x38] sm:$0xff]
    %v1549 = vld [vmem:[%s1540 + $0x40] sm:$0xff]
    %v1550 = vld [vmem:[%s1540 + $0x48] sm:$0xff]
    %v1551 = vld [vmem:[%s1540 + $0x50] sm:$0xff]
    %v1552 = vld [vmem:[%s1540 + $0x58] sm:$0xff]
    %v1553 = vld [vmem:[%s1540 + $0x60] sm:$0xff]
    %v1554 = vld [vmem:[%s1540 + $0x68] sm:$0xff]
    %v1555 = vld [vmem:[%s1540 + $0x70] sm:$0xff]
    %v1556 = vld [vmem:[%s1540 + $0x78] sm:$0xff]
    %v1557 = vld [vmem:[%s1540 + $0x80] sm:$0xff]
    %v1558 = vld [vmem:[%s1540 + $0x88] sm:$0xff]
    %v1559 = vld [vmem:[%s1540 + $0x90] sm:$0xff]
    %v1560 = vld [vmem:[%s1540 + $0x98] sm:$0xff]
    %v1561 = vld [vmem:[%s1540 + $0xa0] sm:$0xff]
    %v1562 = vld [vmem:[%s1540 + $0xa8] sm:$0xff]
    %v1563 = vld [vmem:[%s1540 + $0xb0] sm:$0xff]
    %v1564 = vld [vmem:[%s1540 + $0xb8] sm:$0xff]
    %v1565 = vld [vmem:[%s1540 + $0xc0] sm:$0xff]
    %v1566 = vld [vmem:[%s1540 + $0xc8] sm:$0xff]
    %v1567 = vld [vmem:[%s1540 + $0xd0] sm:$0xff]
    %v1568 = vld [vmem:[%s1540 + $0xd8] sm:$0xff]
    %v1569 = vld [vmem:[%s1540 + $0xe0] sm:$0xff]
    %v1570 = vld [vmem:[%s1540 + $0xe8] sm:$0xff]
    %v1571 = vld [vmem:[%s1540 + $0xf0] sm:$0xff]
    %v1572 = vld [vmem:[%s1540 + $0xf8] sm:$0xff]
    %v1605 = vunpack.c.l.b16 %v1541
    %v1606 = vunpack.c.h.b16 %v1541
    %v1607 = vunpack.c.l.b16 %v1542
    %v1608 = vunpack.c.h.b16 %v1542
    %v1609 = vunpack.c.l.b16 %v1543
    %v1610 = vunpack.c.h.b16 %v1543
    %v1611 = vunpack.c.l.b16 %v1544
    %v1612 = vunpack.c.h.b16 %v1544
    %v1613 = vunpack.c.l.b16 %v1545
    %v1614 = vunpack.c.h.b16 %v1545
    %v1615 = vunpack.c.l.b16 %v1546
    %v1616 = vunpack.c.h.b16 %v1546
    %v1617 = vunpack.c.l.b16 %v1547
    %v1618 = vunpack.c.h.b16 %v1547
    %v1619 = vunpack.c.l.b16 %v1548
    %v1620 = vunpack.c.h.b16 %v1548
    %v1621 = vunpack.c.l.b16 %v1549
    %v1622 = vunpack.c.h.b16 %v1549
    %v1623 = vunpack.c.l.b16 %v1550
    %v1624 = vunpack.c.h.b16 %v1550
    %v1625 = vunpack.c.l.b16 %v1551
    %v1626 = vunpack.c.h.b16 %v1551
    %v1627 = vunpack.c.l.b16 %v1552
    %v1628 = vunpack.c.h.b16 %v1552
    %v1629 = vunpack.c.l.b16 %v1553
    %v1630 = vunpack.c.h.b16 %v1553
    %v1631 = vunpack.c.l.b16 %v1554
    %v1632 = vunpack.c.h.b16 %v1554
    %v1633 = vunpack.c.l.b16 %v1555
    %v1634 = vunpack.c.h.b16 %v1555
    %v1635 = vunpack.c.l.b16 %v1556
    %v1636 = vunpack.c.h.b16 %v1556
    %v1637 = vunpack.c.l.b16 %v1557
    %v1638 = vunpack.c.h.b16 %v1557
    %v1639 = vunpack.c.l.b16 %v1558
    %v1640 = vunpack.c.h.b16 %v1558
    %v1641 = vunpack.c.l.b16 %v1559
    %v1642 = vunpack.c.h.b16 %v1559
    %v1643 = vunpack.c.l.b16 %v1560
    %v1644 = vunpack.c.h.b16 %v1560
    %v1645 = vunpack.c.l.b16 %v1561
    %v1646 = vunpack.c.h.b16 %v1561
    %v1647 = vunpack.c.l.b16 %v1562
    %v1648 = vunpack.c.h.b16 %v1562
    %v1649 = vunpack.c.l.b16 %v1563
    %v1650 = vunpack.c.h.b16 %v1563
    %v1651 = vunpack.c.l.b16 %v1564
    %v1652 = vunpack.c.h.b16 %v1564
    %v1653 = vunpack.c.l.b16 %v1565
    %v1654 = vunpack.c.h.b16 %v1565
    %v1655 = vunpack.c.l.b16 %v1566
    %v1656 = vunpack.c.h.b16 %v1566
    %v1657 = vunpack.c.l.b16 %v1567
    %v1658 = vunpack.c.h.b16 %v1567
    %v1659 = vunpack.c.l.b16 %v1568
    %v1660 = vunpack.c.h.b16 %v1568
    %v1661 = vunpack.c.l.b16 %v1569
    %v1662 = vunpack.c.h.b16 %v1569
    %v1663 = vunpack.c.l.b16 %v1570
    %v1664 = vunpack.c.h.b16 %v1570
    %v1665 = vunpack.c.l.b16 %v1571
    %v1666 = vunpack.c.h.b16 %v1571
    %v1667 = vunpack.c.l.b16 %v1572
    %v1668 = vunpack.c.h.b16 %v1572
    %v1669 = vpack.c.b16 %v1607, %v1605
    %v1670 = vpack.c.b16 %v1608, %v1606
    %v1671 = vpack.c.b16 %v1611, %v1609
    %v1672 = vpack.c.b16 %v1612, %v1610
    %v1673 = vpack.c.b16 %v1615, %v1613
    %v1674 = vpack.c.b16 %v1616, %v1614
    %v1675 = vpack.c.b16 %v1619, %v1617
    %v1676 = vpack.c.b16 %v1620, %v1618
    %v1677 = vpack.c.b16 %v1623, %v1621
    %v1678 = vpack.c.b16 %v1624, %v1622
    %v1679 = vpack.c.b16 %v1627, %v1625
    %v1680 = vpack.c.b16 %v1628, %v1626
    %v1681 = vpack.c.b16 %v1631, %v1629
    %v1682 = vpack.c.b16 %v1632, %v1630
    %v1683 = vpack.c.b16 %v1635, %v1633
    %v1684 = vpack.c.b16 %v1636, %v1634
    %v1685 = vpack.c.b16 %v1639, %v1637
    %v1686 = vpack.c.b16 %v1640, %v1638
    %v1687 = vpack.c.b16 %v1643, %v1641
    %v1688 = vpack.c.b16 %v1644, %v1642
    %v1689 = vpack.c.b16 %v1647, %v1645
    %v1690 = vpack.c.b16 %v1648, %v1646
    %v1691 = vpack.c.b16 %v1651, %v1649
    %v1692 = vpack.c.b16 %v1652, %v1650
    %v1693 = vpack.c.b16 %v1655, %v1653
    %v1694 = vpack.c.b16 %v1656, %v1654
    %v1695 = vpack.c.b16 %v1659, %v1657
    %v1696 = vpack.c.b16 %v1660, %v1658
    %v1697 = vpack.c.b16 %v1663, %v1661
    %v1698 = vpack.c.b16 %v1664, %v1662
    %v1699 = vpack.c.b16 %v1667, %v1665
    %v1700 = vpack.c.b16 %v1668, %v1666
    %1733 = vmatprep.subr.bf16.mxu0 %v1670
    %1734 = vmatpush1.bf16.msra.mxu0 %v1669
    %1735 = vmatprep.subr.bf16.mxu0 %v1672
    %1736 = vmatpush1.bf16.msra.mxu0 %v1671
    %1737 = vmatprep.subr.bf16.mxu0 %v1674
    %1738 = vmatpush1.bf16.msra.mxu0 %v1673
    %1739 = vmatprep.subr.bf16.mxu0 %v1676
    %1740 = vmatpush1.bf16.msra.mxu0 %v1675
    %1741 = vmatprep.subr.bf16.mxu0 %v1678
    %1742 = vmatpush1.bf16.msra.mxu0 %v1677
    %1743 = vmatprep.subr.bf16.mxu0 %v1680
    %1744 = vmatpush1.bf16.msra.mxu0 %v1679
    %1745 = vmatprep.subr.bf16.mxu0 %v1682
    %1746 = vmatpush1.bf16.msra.mxu0 %v1681
    %1747 = vmatprep.subr.bf16.mxu0 %v1684
    %1748 = vmatpush1.bf16.msra.mxu0 %v1683
    %1749 = vmatprep.subr.bf16.mxu0 %v1686
    %1750 = vmatpush1.bf16.msra.mxu0 %v1685
    %1751 = vmatprep.subr.bf16.mxu0 %v1688
    %1752 = vmatpush1.bf16.msra.mxu0 %v1687
    %1753 = vmatprep.subr.bf16.mxu0 %v1690
    %1754 = vmatpush1.bf16.msra.mxu0 %v1689
    %1755 = vmatprep.subr.bf16.mxu0 %v1692
    %1756 = vmatpush1.bf16.msra.mxu0 %v1691
    %1757 = vmatprep.subr.bf16.mxu0 %v1694
    %1758 = vmatpush1.bf16.msra.mxu0 %v1693
    %1759 = vmatprep.subr.bf16.mxu0 %v1696
    %1760 = vmatpush1.bf16.msra.mxu0 %v1695
    %1761 = vmatprep.subr.bf16.mxu0 %v1698
    %1762 = vmatpush1.bf16.msra.mxu0 %v1697
    %1763 = vmatprep.subr.bf16.mxu0 %v1700
    %1764 = vmatpush1.bf16.msra.mxu0 %v1699
    %1765 = vmatprep.mubr.bf16.mxu0 %v1533
    %1766 = vmatmul.mubr.bf16.gmra.mrb[0].mxu0 %v1532
    %v1767 = vpop.f32.mrb[0].mxu0
    %v1768 = vadd.f32 0.0, %v1767
    %v1769 = vpop.f32.mrb[0].mxu0
    %v1770 = vadd.f32 0.0, %v1769
    %v1771 = vpop.f32.mrb[0].mxu0
    %v1772 = vadd.f32 0.0, %v1771
    %v1773 = vpop.f32.mrb[0].mxu0
    %v1774 = vadd.f32 0.0, %v1773
    %1775 = vmatprep.mubr.bf16.mxu0 %v1535
    %1776 = vmatmul.mubr.bf16.gmra.mrb[0].mxu0 %v1534
    %v1777 = vpop.f32.mrb[0].mxu0
    %v1778 = vadd.f32 0.0, %v1777
    %v1779 = vpop.f32.mrb[0].mxu0
    %v1780 = vadd.f32 0.0, %v1779
    %v1781 = vpop.f32.mrb[0].mxu0
    %v1782 = vadd.f32 0.0, %v1781
    %v1783 = vpop.f32.mrb[0].mxu0
    %v1784 = vadd.f32 0.0, %v1783
    %1785 = vmatprep.mubr.bf16.mxu0 %v1537
    %1786 = vmatmul.mubr.bf16.gmra.mrb[0].mxu0 %v1536
    %v1787 = vpop.f32.mrb[0].mxu0
    %v1788 = vadd.f32 0.0, %v1787
    %v1789 = vpop.f32.mrb[0].mxu0
    %v1790 = vadd.f32 0.0, %v1789
    %v1791 = vpop.f32.mrb[0].mxu0
    %v1792 = vadd.f32 0.0, %v1791
    %v1793 = vpop.f32.mrb[0].mxu0
    %v1794 = vadd.f32 0.0, %v1793
    %1795 = vmatprep.mubr.bf16.mxu0 %v1539
    %1796 = vmatmul.mubr.bf16.gmra.mrb[0].mxu0 %v1538
    %v1797 = vpop.f32.mrb[0].mxu0
    %v1798 = vadd.f32 0.0, %v1797
    %v1799 = vpop.f32.mrb[0].mxu0
    %v1800 = vadd.f32 0.0, %v1799
    %v1801 = vpop.f32.mrb[0].mxu0
    %v1802 = vadd.f32 0.0, %v1801
    %v1803 = vpop.f32.mrb[0].mxu0
    %v1804 = vadd.f32 0.0, %v1803
    %1805 = vdwg.mxu0
    %s1806 = scalar_lea.vmem %s6, 2
    %v1807 = vld [vmem:[%s1806] sm:$0x3]
    %s1808 = scalar_lea.vmem %s7, 2
    %v1809 = vld [vmem:[%s1808] sm:$0x3]
    %v1810 = vadd.f32 %v1768, %v1772
    %v1811 = vadd.f32 %v1810, %v1778
    %v1812 = vadd.f32 %v1811, %v1782
    %v1813 = vadd.f32 %v1812, %v1788
    %v1814 = vadd.f32 %v1813, %v1792
    %v1815 = vadd.f32 %v1814, %v1798
    %v1816 = vadd.f32 %v1815, %v1802
    %v1817 = vrot.slane %v1816, 4
    %v1818 = vadd.f32 %v1816, %v1817
    %v1819 = vrot.slane %v1818, 2
    %v1820 = vadd.f32 %v1818, %v1819
    %v1821 = vrot.slane %v1820, 1
    %v1822 = vadd.f32 %v1820, %v1821
    %v1823 = vadd.f32 %v1770, %v1774
    %v1824 = vadd.f32 %v1823, %v1780
    %v1825 = vadd.f32 %v1824, %v1784
    %v1826 = vadd.f32 %v1825, %v1790
    %v1827 = vadd.f32 %v1826, %v1794
    %v1828 = vadd.f32 %v1827, %v1800
    %v1829 = vadd.f32 %v1828, %v1804
    %v1830 = vrot.slane %v1829, 4
    %v1831 = vadd.f32 %v1829, %v1830
    %v1832 = vrot.slane %v1831, 2
    %v1833 = vadd.f32 %v1831, %v1832
    %v1834 = vrot.slane %v1833, 1
    %v1835 = vadd.f32 %v1833, %v1834
    %v1836 = vmul.f32 %v1768, %v1768
    %v1837 = vmul.f32 %v1770, %v1770
    %v1838 = vmul.f32 %v1772, %v1772
    %v1839 = vmul.f32 %v1774, %v1774
    %v1840 = vmul.f32 %v1778, %v1778
    %v1841 = vmul.f32 %v1780, %v1780
    %v1842 = vmul.f32 %v1782, %v1782
    %v1843 = vmul.f32 %v1784, %v1784
    %v1844 = vmul.f32 %v1788, %v1788
    %v1845 = vmul.f32 %v1790, %v1790
    %v1846 = vmul.f32 %v1792, %v1792
    %v1847 = vmul.f32 %v1794, %v1794
    %v1848 = vmul.f32 %v1798, %v1798
    %v1849 = vmul.f32 %v1800, %v1800
    %v1850 = vmul.f32 %v1802, %v1802
    %v1851 = vmul.f32 %v1804, %v1804
    %v1852 = vadd.f32 %v1836, %v1838
    %v1853 = vadd.f32 %v1852, %v1840
    %v1854 = vadd.f32 %v1853, %v1842
    %v1855 = vadd.f32 %v1854, %v1844
    %v1856 = vadd.f32 %v1855, %v1846
    %v1857 = vadd.f32 %v1856, %v1848
    %v1858 = vadd.f32 %v1857, %v1850
    %v1859 = vrot.slane %v1858, 4
    %v1860 = vadd.f32 %v1858, %v1859
    %v1861 = vrot.slane %v1860, 2
    %v1862 = vadd.f32 %v1860, %v1861
    %v1863 = vrot.slane %v1862, 1
    %v1864 = vadd.f32 %v1862, %v1863
    %v1865 = vadd.f32 %v1837, %v1839
    %v1866 = vadd.f32 %v1865, %v1841
    %v1867 = vadd.f32 %v1866, %v1843
    %v1868 = vadd.f32 %v1867, %v1845
    %v1869 = vadd.f32 %v1868, %v1847
    %v1870 = vadd.f32 %v1869, %v1849
    %v1871 = vadd.f32 %v1870, %v1851
    %v1872 = vrot.slane %v1871, 4
    %v1873 = vadd.f32 %v1871, %v1872
    %v1874 = vrot.slane %v1873, 2
    %v1875 = vadd.f32 %v1873, %v1874
    %v1876 = vrot.slane %v1875, 1
    %v1877 = vadd.f32 %v1875, %v1876
    %v1878 = vmul.f32 %v1822, 0.015625
    %v1879 = vmul.f32 %v1835, 0.015625
    %v1880 = vmul.f32 %v1864, 0.015625
    %v1881 = vmul.f32 %v1877, 0.015625
    %v1882 = vmul.f32 %v1878, %v1878
    %v1883 = vmul.f32 %v1879, %v1879
    %v1884 = vsub.f32 %v1880, %v1882
    %v1885 = vsub.f32 %v1881, %v1883
    %v1886 = vmax.f32 %v1884, 0.0
    %v1887 = vmax.f32 %v1885, 0.0
    %v1888 = vsub.f32 %v1768, %v1878
    %v1889 = vsub.f32 %v1770, %v1879
    %v1890 = vsub.f32 %v1772, %v1878
    %v1891 = vsub.f32 %v1774, %v1879
    %v1892 = vsub.f32 %v1778, %v1878
    %v1893 = vsub.f32 %v1780, %v1879
    %v1894 = vsub.f32 %v1782, %v1878
    %v1895 = vsub.f32 %v1784, %v1879
    %v1896 = vsub.f32 %v1788, %v1878
    %v1897 = vsub.f32 %v1790, %v1879
    %v1898 = vsub.f32 %v1792, %v1878
    %v1899 = vsub.f32 %v1794, %v1879
    %v1900 = vsub.f32 %v1798, %v1878
    %v1901 = vsub.f32 %v1800, %v1879
    %v1902 = vsub.f32 %v1802, %v1878
    %v1903 = vsub.f32 %v1804, %v1879
    %v1904 = vadd.f32 %v1886, 1e-05
    %v1905 = vadd.f32 %v1887, 1e-05
    %v1906 = vrsqrt.pop %v1904
    %v1907 = vrsqrt.pop %v1905
    %v1908 = vmul.f32 %v1888, %v1906
    %v1909 = vmul.f32 %v1889, %v1907
    %v1910 = vmul.f32 %v1890, %v1906
    %v1911 = vmul.f32 %v1891, %v1907
    %v1912 = vmul.f32 %v1892, %v1906
    %v1913 = vmul.f32 %v1893, %v1907
    %v1914 = vmul.f32 %v1894, %v1906
    %v1915 = vmul.f32 %v1895, %v1907
    %v1916 = vmul.f32 %v1896, %v1906
    %v1917 = vmul.f32 %v1897, %v1907
    %v1918 = vmul.f32 %v1898, %v1906
    %v1919 = vmul.f32 %v1899, %v1907
    %v1920 = vmul.f32 %v1900, %v1906
    %v1921 = vmul.f32 %v1901, %v1907
    %v1922 = vmul.f32 %v1902, %v1906
    %v1923 = vmul.f32 %v1903, %v1907
    %v1925 = vlaneseq
    %v1926 = vshrl.u32 %v1925, 7
    %v1927 = vsub.s32 0, %v1926
    %v1928 = vrot.slane %v1807, %v1927
    %v1929 = vlaneseq
    %v1930 = vshrl.u32 %v1929, 7
    %v1931 = vsub.s32 1, %v1930
    %v1932 = vrot.slane %v1807, %v1931
    %v1935 = vmul.f32 %v1908, %v1928
    %v1936 = vmul.f32 %v1909, %v1932
    %v1937 = vmul.f32 %v1910, %v1928
    %v1938 = vmul.f32 %v1911, %v1932
    %v1939 = vmul.f32 %v1912, %v1928
    %v1940 = vmul.f32 %v1913, %v1932
    %v1941 = vmul.f32 %v1914, %v1928
    %v1942 = vmul.f32 %v1915, %v1932
    %v1943 = vmul.f32 %v1916, %v1928
    %v1944 = vmul.f32 %v1917, %v1932
    %v1945 = vmul.f32 %v1918, %v1928
    %v1946 = vmul.f32 %v1919, %v1932
    %v1947 = vmul.f32 %v1920, %v1928
    %v1948 = vmul.f32 %v1921, %v1932
    %v1949 = vmul.f32 %v1922, %v1928
    %v1950 = vmul.f32 %v1923, %v1932
    %v1952 = vlaneseq
    %v1953 = vshrl.u32 %v1952, 7
    %v1954 = vsub.s32 0, %v1953
    %v1955 = vrot.slane %v1809, %v1954
    %v1956 = vlaneseq
    %v1957 = vshrl.u32 %v1956, 7
    %v1958 = vsub.s32 1, %v1957
    %v1959 = vrot.slane %v1809, %v1958
    %v1962 = vadd.f32 %v1935, %v1955
    %v1963 = vadd.f32 %v1936, %v1959
    %v1964 = vadd.f32 %v1937, %v1955
    %v1965 = vadd.f32 %v1938, %v1959
    %v1966 = vadd.f32 %v1939, %v1955
    %v1967 = vadd.f32 %v1940, %v1959
    %v1968 = vadd.f32 %v1941, %v1955
    %v1969 = vadd.f32 %v1942, %v1959
    %v1970 = vadd.f32 %v1943, %v1955
    %v1971 = vadd.f32 %v1944, %v1959
    %v1972 = vadd.f32 %v1945, %v1955
    %v1973 = vadd.f32 %v1946, %v1959
    %v1974 = vadd.f32 %v1947, %v1955
    %v1975 = vadd.f32 %v1948, %v1959
    %v1976 = vadd.f32 %v1949, %v1955
    %v1977 = vadd.f32 %v1950, %v1959
    %v1978 = vmax.f32 %v1962, 0.0
    %v1979 = vmax.f32 %v1963, 0.0
    %v1980 = vmax.f32 %v1964, 0.0
    %v1981 = vmax.f32 %v1965, 0.0
    %v1982 = vmax.f32 %v1966, 0.0
    %v1983 = vmax.f32 %v1967, 0.0
    %v1984 = vmax.f32 %v1968, 0.0
    %v1985 = vmax.f32 %v1969, 0.0
    %v1986 = vmax.f32 %v1970, 0.0
    %v1987 = vmax.f32 %v1971, 0.0
    %v1988 = vmax.f32 %v1972, 0.0
    %v1989 = vmax.f32 %v1973, 0.0
    %v1990 = vmax.f32 %v1974, 0.0
    %v1991 = vmax.f32 %v1975, 0.0
    %v1992 = vmax.f32 %v1976, 0.0
    %v1993 = vmax.f32 %v1977, 0.0
    %v1994 = vpack.c.bf16 %v1980, %v1978
    %v1995 = vpack.c.bf16 %v1981, %v1979
    %v1996 = vpack.c.bf16 %v1984, %v1982
    %v1997 = vpack.c.bf16 %v1985, %v1983
    %v1998 = vpack.c.bf16 %v1988, %v1986
    %v1999 = vpack.c.bf16 %v1989, %v1987
    %v2000 = vpack.c.bf16 %v1992, %v1990
    %v2001 = vpack.c.bf16 %v1993, %v1991
    %s2002 = scalar_lea.vmem [#allocation8], 256
    %v2003 = vld [vmem:[%s2002] sm:$0xff]
    %v2004 = vld [vmem:[%s2002 + $0x8] sm:$0xff]
    %v2005 = vld [vmem:[%s2002 + $0x10] sm:$0xff]
    %v2006 = vld [vmem:[%s2002 + $0x18] sm:$0xff]
    %v2007 = vld [vmem:[%s2002 + $0x20] sm:$0xff]
    %v2008 = vld [vmem:[%s2002 + $0x28] sm:$0xff]
    %v2009 = vld [vmem:[%s2002 + $0x30] sm:$0xff]
    %v2010 = vld [vmem:[%s2002 + $0x38] sm:$0xff]
    %v2011 = vld [vmem:[%s2002 + $0x40] sm:$0xff]
    %v2012 = vld [vmem:[%s2002 + $0x48] sm:$0xff]
    %v2013 = vld [vmem:[%s2002 + $0x50] sm:$0xff]
    %v2014 = vld [vmem:[%s2002 + $0x58] sm:$0xff]
    %v2015 = vld [vmem:[%s2002 + $0x60] sm:$0xff]
    %v2016 = vld [vmem:[%s2002 + $0x68] sm:$0xff]
    %v2017 = vld [vmem:[%s2002 + $0x70] sm:$0xff]
    %v2018 = vld [vmem:[%s2002 + $0x78] sm:$0xff]
    %v2019 = vld [vmem:[%s2002 + $0x80] sm:$0xff]
    %v2020 = vld [vmem:[%s2002 + $0x88] sm:$0xff]
    %v2021 = vld [vmem:[%s2002 + $0x90] sm:$0xff]
    %v2022 = vld [vmem:[%s2002 + $0x98] sm:$0xff]
    %v2023 = vld [vmem:[%s2002 + $0xa0] sm:$0xff]
    %v2024 = vld [vmem:[%s2002 + $0xa8] sm:$0xff]
    %v2025 = vld [vmem:[%s2002 + $0xb0] sm:$0xff]
    %v2026 = vld [vmem:[%s2002 + $0xb8] sm:$0xff]
    %v2027 = vld [vmem:[%s2002 + $0xc0] sm:$0xff]
    %v2028 = vld [vmem:[%s2002 + $0xc8] sm:$0xff]
    %v2029 = vld [vmem:[%s2002 + $0xd0] sm:$0xff]
    %v2030 = vld [vmem:[%s2002 + $0xd8] sm:$0xff]
    %v2031 = vld [vmem:[%s2002 + $0xe0] sm:$0xff]
    %v2032 = vld [vmem:[%s2002 + $0xe8] sm:$0xff]
    %v2033 = vld [vmem:[%s2002 + $0xf0] sm:$0xff]
    %v2034 = vld [vmem:[%s2002 + $0xf8] sm:$0xff]
    %v2067 = vunpack.c.l.b16 %v2003
    %v2068 = vunpack.c.h.b16 %v2003
    %v2069 = vunpack.c.l.b16 %v2004
    %v2070 = vunpack.c.h.b16 %v2004
    %v2071 = vunpack.c.l.b16 %v2005
    %v2072 = vunpack.c.h.b16 %v2005
    %v2073 = vunpack.c.l.b16 %v2006
    %v2074 = vunpack.c.h.b16 %v2006
    %v2075 = vunpack.c.l.b16 %v2007
    %v2076 = vunpack.c.h.b16 %v2007
    %v2077 = vunpack.c.l.b16 %v2008
    %v2078 = vunpack.c.h.b16 %v2008
    %v2079 = vunpack.c.l.b16 %v2009
    %v2080 = vunpack.c.h.b16 %v2009
    %v2081 = vunpack.c.l.b16 %v2010
    %v2082 = vunpack.c.h.b16 %v2010
    %v2083 = vunpack.c.l.b16 %v2011
    %v2084 = vunpack.c.h.b16 %v2011
    %v2085 = vunpack.c.l.b16 %v2012
    %v2086 = vunpack.c.h.b16 %v2012
    %v2087 = vunpack.c.l.b16 %v2013
    %v2088 = vunpack.c.h.b16 %v2013
    %v2089 = vunpack.c.l.b16 %v2014
    %v2090 = vunpack.c.h.b16 %v2014
    %v2091 = vunpack.c.l.b16 %v2015
    %v2092 = vunpack.c.h.b16 %v2015
    %v2093 = vunpack.c.l.b16 %v2016
    %v2094 = vunpack.c.h.b16 %v2016
    %v2095 = vunpack.c.l.b16 %v2017
    %v2096 = vunpack.c.h.b16 %v2017
    %v2097 = vunpack.c.l.b16 %v2018
    %v2098 = vunpack.c.h.b16 %v2018
    %v2099 = vunpack.c.l.b16 %v2019
    %v2100 = vunpack.c.h.b16 %v2019
    %v2101 = vunpack.c.l.b16 %v2020
    %v2102 = vunpack.c.h.b16 %v2020
    %v2103 = vunpack.c.l.b16 %v2021
    %v2104 = vunpack.c.h.b16 %v2021
    %v2105 = vunpack.c.l.b16 %v2022
    %v2106 = vunpack.c.h.b16 %v2022
    %v2107 = vunpack.c.l.b16 %v2023
    %v2108 = vunpack.c.h.b16 %v2023
    %v2109 = vunpack.c.l.b16 %v2024
    %v2110 = vunpack.c.h.b16 %v2024
    %v2111 = vunpack.c.l.b16 %v2025
    %v2112 = vunpack.c.h.b16 %v2025
    %v2113 = vunpack.c.l.b16 %v2026
    %v2114 = vunpack.c.h.b16 %v2026
    %v2115 = vunpack.c.l.b16 %v2027
    %v2116 = vunpack.c.h.b16 %v2027
    %v2117 = vunpack.c.l.b16 %v2028
    %v2118 = vunpack.c.h.b16 %v2028
    %v2119 = vunpack.c.l.b16 %v2029
    %v2120 = vunpack.c.h.b16 %v2029
    %v2121 = vunpack.c.l.b16 %v2030
    %v2122 = vunpack.c.h.b16 %v2030
    %v2123 = vunpack.c.l.b16 %v2031
    %v2124 = vunpack.c.h.b16 %v2031
    %v2125 = vunpack.c.l.b16 %v2032
    %v2126 = vunpack.c.h.b16 %v2032
    %v2127 = vunpack.c.l.b16 %v2033
    %v2128 = vunpack.c.h.b16 %v2033
    %v2129 = vunpack.c.l.b16 %v2034
    %v2130 = vunpack.c.h.b16 %v2034
    %v2131 = vpack.c.b16 %v2069, %v2067
    %v2132 = vpack.c.b16 %v2070, %v2068
    %v2133 = vpack.c.b16 %v2073, %v2071
    %v2134 = vpack.c.b16 %v2074, %v2072
    %v2135 = vpack.c.b16 %v2077, %v2075
    %v2136 = vpack.c.b16 %v2078, %v2076
    %v2137 = vpack.c.b16 %v2081, %v2079
    %v2138 = vpack.c.b16 %v2082, %v2080
    %v2139 = vpack.c.b16 %v2085, %v2083
    %v2140 = vpack.c.b16 %v2086, %v2084
    %v2141 = vpack.c.b16 %v2089, %v2087
    %v2142 = vpack.c.b16 %v2090, %v2088
    %v2143 = vpack.c.b16 %v2093, %v2091
    %v2144 = vpack.c.b16 %v2094, %v2092
    %v2145 = vpack.c.b16 %v2097, %v2095
    %v2146 = vpack.c.b16 %v2098, %v2096
    %v2147 = vpack.c.b16 %v2101, %v2099
    %v2148 = vpack.c.b16 %v2102, %v2100
    %v2149 = vpack.c.b16 %v2105, %v2103
    %v2150 = vpack.c.b16 %v2106, %v2104
    %v2151 = vpack.c.b16 %v2109, %v2107
    %v2152 = vpack.c.b16 %v2110, %v2108
    %v2153 = vpack.c.b16 %v2113, %v2111
    %v2154 = vpack.c.b16 %v2114, %v2112
    %v2155 = vpack.c.b16 %v2117, %v2115
    %v2156 = vpack.c.b16 %v2118, %v2116
    %v2157 = vpack.c.b16 %v2121, %v2119
    %v2158 = vpack.c.b16 %v2122, %v2120
    %v2159 = vpack.c.b16 %v2125, %v2123
    %v2160 = vpack.c.b16 %v2126, %v2124
    %v2161 = vpack.c.b16 %v2129, %v2127
    %v2162 = vpack.c.b16 %v2130, %v2128
    %2195 = vmatprep.subr.bf16.mxu0 %v2132
    %2196 = vmatpush1.bf16.msra.mxu0 %v2131
    %2197 = vmatprep.subr.bf16.mxu0 %v2134
    %2198 = vmatpush1.bf16.msra.mxu0 %v2133
    %2199 = vmatprep.subr.bf16.mxu0 %v2136
    %2200 = vmatpush1.bf16.msra.mxu0 %v2135
    %2201 = vmatprep.subr.bf16.mxu0 %v2138
    %2202 = vmatpush1.bf16.msra.mxu0 %v2137
    %2203 = vmatprep.subr.bf16.mxu0 %v2140
    %2204 = vmatpush1.bf16.msra.mxu0 %v2139
    %2205 = vmatprep.subr.bf16.mxu0 %v2142
    %2206 = vmatpush1.bf16.msra.mxu0 %v2141
    %2207 = vmatprep.subr.bf16.mxu0 %v2144
    %2208 = vmatpush1.bf16.msra.mxu0 %v2143
    %2209 = vmatprep.subr.bf16.mxu0 %v2146
    %2210 = vmatpush1.bf16.msra.mxu0 %v2145
    %2211 = vmatprep.subr.bf16.mxu0 %v2148
    %2212 = vmatpush1.bf16.msra.mxu0 %v2147
    %2213 = vmatprep.subr.bf16.mxu0 %v2150
    %2214 = vmatpush1.bf16.msra.mxu0 %v2149
    %2215 = vmatprep.subr.bf16.mxu0 %v2152
    %2216 = vmatpush1.bf16.msra.mxu0 %v2151
    %2217 = vmatprep.subr.bf16.mxu0 %v2154
    %2218 = vmatpush1.bf16.msra.mxu0 %v2153
    %2219 = vmatprep.subr.bf16.mxu0 %v2156
    %2220 = vmatpush1.bf16.msra.mxu0 %v2155
    %2221 = vmatprep.subr.bf16.mxu0 %v2158
    %2222 = vmatpush1.bf16.msra.mxu0 %v2157
    %2223 = vmatprep.subr.bf16.mxu0 %v2160
    %2224 = vmatpush1.bf16.msra.mxu0 %v2159
    %2225 = vmatprep.subr.bf16.mxu0 %v2162
    %2226 = vmatpush1.bf16.msra.mxu0 %v2161
    %2227 = vmatprep.mubr.bf16.mxu0 %v1995
    %2228 = vmatmul.mubr.bf16.gmra.mrb[0].mxu0 %v1994
    %v2229 = vpop.f32.mrb[0].mxu0
    %v2230 = vadd.f32 0.0, %v2229
    %v2231 = vpop.f32.mrb[0].mxu0
    %v2232 = vadd.f32 0.0, %v2231
    %v2233 = vpop.f32.mrb[0].mxu0
    %v2234 = vadd.f32 0.0, %v2233
    %v2235 = vpop.f32.mrb[0].mxu0
    %v2236 = vadd.f32 0.0, %v2235
    %2237 = vmatprep.mubr.bf16.mxu0 %v1997
    %2238 = vmatmul.mubr.bf16.gmra.mrb[0].mxu0 %v1996
    %v2239 = vpop.f32.mrb[0].mxu0
    %v2240 = vadd.f32 0.0, %v2239
    %v2241 = vpop.f32.mrb[0].mxu0
    %v2242 = vadd.f32 0.0, %v2241
    %v2243 = vpop.f32.mrb[0].mxu0
    %v2244 = vadd.f32 0.0, %v2243
    %v2245 = vpop.f32.mrb[0].mxu0
    %v2246 = vadd.f32 0.0, %v2245
    %2247 = vmatprep.mubr.bf16.mxu0 %v1999
    %2248 = vmatmul.mubr.bf16.gmra.mrb[0].mxu0 %v1998
    %v2249 = vpop.f32.mrb[0].mxu0
    %v2250 = vadd.f32 0.0, %v2249
    %v2251 = vpop.f32.mrb[0].mxu0
    %v2252 = vadd.f32 0.0, %v2251
    %v2253 = vpop.f32.mrb[0].mxu0
    %v2254 = vadd.f32 0.0, %v2253
    %v2255 = vpop.f32.mrb[0].mxu0
    %v2256 = vadd.f32 0.0, %v2255
    %2257 = vmatprep.mubr.bf16.mxu0 %v2001
    %2258 = vmatmul.mubr.bf16.gmra.mrb[0].mxu0 %v2000
    %v2259 = vpop.f32.mrb[0].mxu0
    %v2260 = vadd.f32 0.0, %v2259
    %v2261 = vpop.f32.mrb[0].mxu0
    %v2262 = vadd.f32 0.0, %v2261
    %v2263 = vpop.f32.mrb[0].mxu0
    %v2264 = vadd.f32 0.0, %v2263
    %v2265 = vpop.f32.mrb[0].mxu0
    %v2266 = vadd.f32 0.0, %v2265
    %2267 = vdwg.mxu0
    %s2268 = scalar_lea.vmem %s8, 2
    %v2269 = vld [vmem:[%s2268] sm:$0x3]
    %s2270 = scalar_lea.vmem %s9, 2
    %v2271 = vld [vmem:[%s2270] sm:$0x3]
    %v2272 = vadd.f32 %v2230, %v2234
    %v2273 = vadd.f32 %v2272, %v2240
    %v2274 = vadd.f32 %v2273, %v2244
    %v2275 = vadd.f32 %v2274, %v2250
    %v2276 = vadd.f32 %v2275, %v2254
    %v2277 = vadd.f32 %v2276, %v2260
    %v2278 = vadd.f32 %v2277, %v2264
    %v2279 = vrot.slane %v2278, 4
    %v2280 = vadd.f32 %v2278, %v2279
    %v2281 = vrot.slane %v2280, 2
    %v2282 = vadd.f32 %v2280, %v2281
    %v2283 = vrot.slane %v2282, 1
    %v2284 = vadd.f32 %v2282, %v2283
    %v2285 = vadd.f32 %v2232, %v2236
    %v2286 = vadd.f32 %v2285, %v2242
    %v2287 = vadd.f32 %v2286, %v2246
    %v2288 = vadd.f32 %v2287, %v2252
    %v2289 = vadd.f32 %v2288, %v2256
    %v2290 = vadd.f32 %v2289, %v2262
    %v2291 = vadd.f32 %v2290, %v2266
    %v2292 = vrot.slane %v2291, 4
    %v2293 = vadd.f32 %v2291, %v2292
    %v2294 = vrot.slane %v2293, 2
    %v2295 = vadd.f32 %v2293, %v2294
    %v2296 = vrot.slane %v2295, 1
    %v2297 = vadd.f32 %v2295, %v2296
    %v2298 = vmul.f32 %v2230, %v2230
    %v2299 = vmul.f32 %v2232, %v2232
    %v2300 = vmul.f32 %v2234, %v2234
    %v2301 = vmul.f32 %v2236, %v2236
    %v2302 = vmul.f32 %v2240, %v2240
    %v2303 = vmul.f32 %v2242, %v2242
    %v2304 = vmul.f32 %v2244, %v2244
    %v2305 = vmul.f32 %v2246, %v2246
    %v2306 = vmul.f32 %v2250, %v2250
    %v2307 = vmul.f32 %v2252, %v2252
    %v2308 = vmul.f32 %v2254, %v2254
    %v2309 = vmul.f32 %v2256, %v2256
    %v2310 = vmul.f32 %v2260, %v2260
    %v2311 = vmul.f32 %v2262, %v2262
    %v2312 = vmul.f32 %v2264, %v2264
    %v2313 = vmul.f32 %v2266, %v2266
    %v2314 = vadd.f32 %v2298, %v2300
    %v2315 = vadd.f32 %v2314, %v2302
    %v2316 = vadd.f32 %v2315, %v2304
    %v2317 = vadd.f32 %v2316, %v2306
    %v2318 = vadd.f32 %v2317, %v2308
    %v2319 = vadd.f32 %v2318, %v2310
    %v2320 = vadd.f32 %v2319, %v2312
    %v2321 = vrot.slane %v2320, 4
    %v2322 = vadd.f32 %v2320, %v2321
    %v2323 = vrot.slane %v2322, 2
    %v2324 = vadd.f32 %v2322, %v2323
    %v2325 = vrot.slane %v2324, 1
    %v2326 = vadd.f32 %v2324, %v2325
    %v2327 = vadd.f32 %v2299, %v2301
    %v2328 = vadd.f32 %v2327, %v2303
    %v2329 = vadd.f32 %v2328, %v2305
    %v2330 = vadd.f32 %v2329, %v2307
    %v2331 = vadd.f32 %v2330, %v2309
    %v2332 = vadd.f32 %v2331, %v2311
    %v2333 = vadd.f32 %v2332, %v2313
    %v2334 = vrot.slane %v2333, 4
    %v2335 = vadd.f32 %v2333, %v2334
    %v2336 = vrot.slane %v2335, 2
    %v2337 = vadd.f32 %v2335, %v2336
    %v2338 = vrot.slane %v2337, 1
    %v2339 = vadd.f32 %v2337, %v2338
    %v2340 = vmul.f32 %v2284, 0.015625
    %v2341 = vmul.f32 %v2297, 0.015625
    %v2342 = vmul.f32 %v2326, 0.015625
    %v2343 = vmul.f32 %v2339, 0.015625
    %v2344 = vmul.f32 %v2340, %v2340
    %v2345 = vmul.f32 %v2341, %v2341
    %v2346 = vsub.f32 %v2342, %v2344
    %v2347 = vsub.f32 %v2343, %v2345
    %v2348 = vmax.f32 %v2346, 0.0
    %v2349 = vmax.f32 %v2347, 0.0
    %v2350 = vsub.f32 %v2230, %v2340
    %v2351 = vsub.f32 %v2232, %v2341
    %v2352 = vsub.f32 %v2234, %v2340
    %v2353 = vsub.f32 %v2236, %v2341
    %v2354 = vsub.f32 %v2240, %v2340
    %v2355 = vsub.f32 %v2242, %v2341
    %v2356 = vsub.f32 %v2244, %v2340
    %v2357 = vsub.f32 %v2246, %v2341
    %v2358 = vsub.f32 %v2250, %v2340
    %v2359 = vsub.f32 %v2252, %v2341
    %v2360 = vsub.f32 %v2254, %v2340
    %v2361 = vsub.f32 %v2256, %v2341
    %v2362 = vsub.f32 %v2260, %v2340
    %v2363 = vsub.f32 %v2262, %v2341
    %v2364 = vsub.f32 %v2264, %v2340
    %v2365 = vsub.f32 %v2266, %v2341
    %v2366 = vadd.f32 %v2348, 1e-05
    %v2367 = vadd.f32 %v2349, 1e-05
    %v2368 = vrsqrt.pop %v2366
    %v2369 = vrsqrt.pop %v2367
    %v2370 = vmul.f32 %v2350, %v2368
    %v2371 = vmul.f32 %v2351, %v2369
    %v2372 = vmul.f32 %v2352, %v2368
    %v2373 = vmul.f32 %v2353, %v2369
    %v2374 = vmul.f32 %v2354, %v2368
    %v2375 = vmul.f32 %v2355, %v2369
    %v2376 = vmul.f32 %v2356, %v2368
    %v2377 = vmul.f32 %v2357, %v2369
    %v2378 = vmul.f32 %v2358, %v2368
    %v2379 = vmul.f32 %v2359, %v2369
    %v2380 = vmul.f32 %v2360, %v2368
    %v2381 = vmul.f32 %v2361, %v2369
    %v2382 = vmul.f32 %v2362, %v2368
    %v2383 = vmul.f32 %v2363, %v2369
    %v2384 = vmul.f32 %v2364, %v2368
    %v2385 = vmul.f32 %v2365, %v2369
    %v2387 = vlaneseq
    %v2388 = vshrl.u32 %v2387, 7
    %v2389 = vsub.s32 0, %v2388
    %v2390 = vrot.slane %v2269, %v2389
    %v2391 = vlaneseq
    %v2392 = vshrl.u32 %v2391, 7
    %v2393 = vsub.s32 1, %v2392
    %v2394 = vrot.slane %v2269, %v2393
    %v2397 = vmul.f32 %v2370, %v2390
    %v2398 = vmul.f32 %v2371, %v2394
    %v2399 = vmul.f32 %v2372, %v2390
    %v2400 = vmul.f32 %v2373, %v2394
    %v2401 = vmul.f32 %v2374, %v2390
    %v2402 = vmul.f32 %v2375, %v2394
    %v2403 = vmul.f32 %v2376, %v2390
    %v2404 = vmul.f32 %v2377, %v2394
    %v2405 = vmul.f32 %v2378, %v2390
    %v2406 = vmul.f32 %v2379, %v2394
    %v2407 = vmul.f32 %v2380, %v2390
    %v2408 = vmul.f32 %v2381, %v2394
    %v2409 = vmul.f32 %v2382, %v2390
    %v2410 = vmul.f32 %v2383, %v2394
    %v2411 = vmul.f32 %v2384, %v2390
    %v2412 = vmul.f32 %v2385, %v2394
    %v2414 = vlaneseq
    %v2415 = vshrl.u32 %v2414, 7
    %v2416 = vsub.s32 0, %v2415
    %v2417 = vrot.slane %v2271, %v2416
    %v2418 = vlaneseq
    %v2419 = vshrl.u32 %v2418, 7
    %v2420 = vsub.s32 1, %v2419
    %v2421 = vrot.slane %v2271, %v2420
    %v2424 = vadd.f32 %v2397, %v2417
    %v2425 = vadd.f32 %v2398, %v2421
    %v2426 = vadd.f32 %v2399, %v2417
    %v2427 = vadd.f32 %v2400, %v2421
    %v2428 = vadd.f32 %v2401, %v2417
    %v2429 = vadd.f32 %v2402, %v2421
    %v2430 = vadd.f32 %v2403, %v2417
    %v2431 = vadd.f32 %v2404, %v2421
    %v2432 = vadd.f32 %v2405, %v2417
    %v2433 = vadd.f32 %v2406, %v2421
    %v2434 = vadd.f32 %v2407, %v2417
    %v2435 = vadd.f32 %v2408, %v2421
    %v2436 = vadd.f32 %v2409, %v2417
    %v2437 = vadd.f32 %v2410, %v2421
    %v2438 = vadd.f32 %v2411, %v2417
    %v2439 = vadd.f32 %v2412, %v2421
    %v2440 = vmax.f32 %v2424, 0.0
    %v2441 = vmax.f32 %v2425, 0.0
    %v2442 = vmax.f32 %v2426, 0.0
    %v2443 = vmax.f32 %v2427, 0.0
    %v2444 = vmax.f32 %v2428, 0.0
    %v2445 = vmax.f32 %v2429, 0.0
    %v2446 = vmax.f32 %v2430, 0.0
    %v2447 = vmax.f32 %v2431, 0.0
    %v2448 = vmax.f32 %v2432, 0.0
    %v2449 = vmax.f32 %v2433, 0.0
    %v2450 = vmax.f32 %v2434, 0.0
    %v2451 = vmax.f32 %v2435, 0.0
    %v2452 = vmax.f32 %v2436, 0.0
    %v2453 = vmax.f32 %v2437, 0.0
    %v2454 = vmax.f32 %v2438, 0.0
    %v2455 = vmax.f32 %v2439, 0.0
    %v2456 = vmul.f32 %v2440, %v2440
    %v2457 = vmul.f32 %v2442, %v2442
    %v2458 = vmul.f32 %v2444, %v2444
    %v2459 = vmul.f32 %v2446, %v2446
    %v2460 = vmul.f32 %v2448, %v2448
    %v2461 = vmul.f32 %v2450, %v2450
    %v2462 = vmul.f32 %v2452, %v2452
    %v2463 = vmul.f32 %v2454, %v2454
    %2464 = vadd.xlane.f32.xlu0 %v2456
    %v2465 = vpop.xlane.xlu0 %2464
    %2466 = vadd.xlane.f32.xlu0 %v2457
    %v2467 = vpop.xlane.xlu0 %2466
    %2468 = vadd.xlane.f32.xlu0 %v2458
    %v2469 = vpop.xlane.xlu0 %2468
    %2470 = vadd.xlane.f32.xlu0 %v2459
    %v2471 = vpop.xlane.xlu0 %2470
    %2472 = vadd.xlane.f32.xlu0 %v2460
    %v2473 = vpop.xlane.xlu0 %2472
    %2474 = vadd.xlane.f32.xlu0 %v2461
    %v2475 = vpop.xlane.xlu0 %2474
    %2476 = vadd.xlane.f32.xlu0 %v2462
    %v2477 = vpop.xlane.xlu0 %2476
    %2478 = vadd.xlane.f32.xlu0 %v2463
    %v2479 = vpop.xlane.xlu0 %2478
    %v2480 = vmax.f32 %v2465, 1e-24
    %v2481 = vmax.f32 %v2467, 1e-24
    %v2482 = vmax.f32 %v2469, 1e-24
    %v2483 = vmax.f32 %v2471, 1e-24
    %v2484 = vmax.f32 %v2473, 1e-24
    %v2485 = vmax.f32 %v2475, 1e-24
    %v2486 = vmax.f32 %v2477, 1e-24
    %v2487 = vmax.f32 %v2479, 1e-24
    %v2488 = vrsqrt.pop %v2480
    %v2489 = vrsqrt.pop %v2481
    %v2490 = vrsqrt.pop %v2482
    %v2491 = vrsqrt.pop %v2483
    %v2492 = vrsqrt.pop %v2484
    %v2493 = vrsqrt.pop %v2485
    %v2494 = vrsqrt.pop %v2486
    %v2495 = vrsqrt.pop %v2487
    %v2496 = vmul.f32 %v2441, %v2441
    %v2497 = vmul.f32 %v2443, %v2443
    %v2498 = vmul.f32 %v2445, %v2445
    %v2499 = vmul.f32 %v2447, %v2447
    %v2500 = vmul.f32 %v2449, %v2449
    %v2501 = vmul.f32 %v2451, %v2451
    %v2502 = vmul.f32 %v2453, %v2453
    %v2503 = vmul.f32 %v2455, %v2455
    %2504 = vadd.xlane.f32.xlu0 %v2496
    %v2505 = vpop.xlane.xlu0 %2504
    %2506 = vadd.xlane.f32.xlu0 %v2497
    %v2507 = vpop.xlane.xlu0 %2506
    %2508 = vadd.xlane.f32.xlu0 %v2498
    %v2509 = vpop.xlane.xlu0 %2508
    %2510 = vadd.xlane.f32.xlu0 %v2499
    %v2511 = vpop.xlane.xlu0 %2510
    %2512 = vadd.xlane.f32.xlu0 %v2500
    %v2513 = vpop.xlane.xlu0 %2512
    %2514 = vadd.xlane.f32.xlu0 %v2501
    %v2515 = vpop.xlane.xlu0 %2514
    %2516 = vadd.xlane.f32.xlu0 %v2502
    %v2517 = vpop.xlane.xlu0 %2516
    %2518 = vadd.xlane.f32.xlu0 %v2503
    %v2519 = vpop.xlane.xlu0 %2518
    %v2520 = vmax.f32 %v2505, 1e-24
    %v2521 = vmax.f32 %v2507, 1e-24
    %v2522 = vmax.f32 %v2509, 1e-24
    %v2523 = vmax.f32 %v2511, 1e-24
    %v2524 = vmax.f32 %v2513, 1e-24
    %v2525 = vmax.f32 %v2515, 1e-24
    %v2526 = vmax.f32 %v2517, 1e-24
    %v2527 = vmax.f32 %v2519, 1e-24
    %v2528 = vrsqrt.pop %v2520
    %v2529 = vrsqrt.pop %v2521
    %v2530 = vrsqrt.pop %v2522
    %v2531 = vrsqrt.pop %v2523
    %v2532 = vrsqrt.pop %v2524
    %v2533 = vrsqrt.pop %v2525
    %v2534 = vrsqrt.pop %v2526
    %v2535 = vrsqrt.pop %v2527
    %v2536 = vmul.f32 %v2440, %v2441
    %v2537 = vmul.f32 %v2442, %v2443
    %v2538 = vmul.f32 %v2444, %v2445
    %v2539 = vmul.f32 %v2446, %v2447
    %v2540 = vmul.f32 %v2448, %v2449
    %v2541 = vmul.f32 %v2450, %v2451
    %v2542 = vmul.f32 %v2452, %v2453
    %v2543 = vmul.f32 %v2454, %v2455
    %2544 = vadd.xlane.f32.xlu0 %v2536
    %v2545 = vpop.xlane.xlu0 %2544
    %2546 = vadd.xlane.f32.xlu0 %v2537
    %v2547 = vpop.xlane.xlu0 %2546
    %2548 = vadd.xlane.f32.xlu0 %v2538
    %v2549 = vpop.xlane.xlu0 %2548
    %2550 = vadd.xlane.f32.xlu0 %v2539
    %v2551 = vpop.xlane.xlu0 %2550
    %2552 = vadd.xlane.f32.xlu0 %v2540
    %v2553 = vpop.xlane.xlu0 %2552
    %2554 = vadd.xlane.f32.xlu0 %v2541
    %v2555 = vpop.xlane.xlu0 %2554
    %2556 = vadd.xlane.f32.xlu0 %v2542
    %v2557 = vpop.xlane.xlu0 %2556
    %2558 = vadd.xlane.f32.xlu0 %v2543
    %v2559 = vpop.xlane.xlu0 %2558
    %v2560 = vmul.f32 %v2545, %v2488
    %v2561 = vmul.f32 %v2547, %v2489
    %v2562 = vmul.f32 %v2549, %v2490
    %v2563 = vmul.f32 %v2551, %v2491
    %v2564 = vmul.f32 %v2553, %v2492
    %v2565 = vmul.f32 %v2555, %v2493
    %v2566 = vmul.f32 %v2557, %v2494
    %v2567 = vmul.f32 %v2559, %v2495
    %v2568 = vmul.f32 %v2560, %v2528
    %v2569 = vmul.f32 %v2561, %v2529
    %v2570 = vmul.f32 %v2562, %v2530
    %v2571 = vmul.f32 %v2563, %v2531
    %v2572 = vmul.f32 %v2564, %v2532
    %v2573 = vmul.f32 %v2565, %v2533
    %v2574 = vmul.f32 %v2566, %v2534
    %v2575 = vmul.f32 %v2567, %v2535
    %v2576 = vsub.f32 1.0, %v2568
    %v2577 = vsub.f32 1.0, %v2569
    %v2578 = vsub.f32 1.0, %v2570
    %v2579 = vsub.f32 1.0, %v2571
    %v2580 = vsub.f32 1.0, %v2572
    %v2581 = vsub.f32 1.0, %v2573
    %v2582 = vsub.f32 1.0, %v2574
    %v2583 = vsub.f32 1.0, %v2575
    %v2584 = vmul.f32 %v2576, %v326
    %v2585 = vmul.f32 %v2577, %v327
    %v2586 = vmul.f32 %v2578, %v328
    %v2587 = vmul.f32 %v2579, %v329
    %v2588 = vmul.f32 %v2580, %v330
    %v2589 = vmul.f32 %v2581, %v331
    %v2590 = vmul.f32 %v2582, %v332
    %v2591 = vmul.f32 %v2583, %v333
    %vm2592 = vcmask 7168
    %v2593 = vsel %vm2592, %v2584, 0.0
    %v2594 = vsel %vm2592, %v2585, 0.0
    %v2595 = vadd.f32 %v2593, %v2594
    %v2596 = vsel %vm2592, %v2586, 0.0
    %v2597 = vadd.f32 %v2595, %v2596
    %v2598 = vsel %vm2592, %v2587, 0.0
    %v2599 = vadd.f32 %v2597, %v2598
    %v2600 = vsel %vm2592, %v2588, 0.0
    %v2601 = vadd.f32 %v2599, %v2600
    %v2602 = vsel %vm2592, %v2589, 0.0
    %v2603 = vadd.f32 %v2601, %v2602
    %v2604 = vsel %vm2592, %v2590, 0.0
    %v2605 = vadd.f32 %v2603, %v2604
    %v2606 = vsel %vm2592, %v2591, 0.0
    %v2607 = vadd.f32 %v2605, %v2606
    %v2608 = vrot.slane %v2607, 4
    %v2609 = vadd.f32 %v2607, %v2608
    %v2610 = vrot.slane %v2609, 2
    %v2611 = vadd.f32 %v2609, %v2610
    %v2612 = vrot.slane %v2611, 1
    %v2613 = vadd.f32 %v2611, %v2612
    %v2614 = vsel %vm2592, %v326, 0.0
    %v2615 = vsel %vm2592, %v327, 0.0
    %v2616 = vadd.f32 %v2614, %v2615
    %v2617 = vsel %vm2592, %v328, 0.0
    %v2618 = vadd.f32 %v2616, %v2617
    %v2619 = vsel %vm2592, %v329, 0.0
    %v2620 = vadd.f32 %v2618, %v2619
    %v2621 = vsel %vm2592, %v330, 0.0
    %v2622 = vadd.f32 %v2620, %v2621
    %v2623 = vsel %vm2592, %v331, 0.0
    %v2624 = vadd.f32 %v2622, %v2623
    %v2625 = vsel %vm2592, %v332, 0.0
    %v2626 = vadd.f32 %v2624, %v2625
    %v2627 = vsel %vm2592, %v333, 0.0
    %v2628 = vadd.f32 %v2626, %v2627
    %v2629 = vrot.slane %v2628, 4
    %v2630 = vadd.f32 %v2628, %v2629
    %v2631 = vrot.slane %v2630, 2
    %v2632 = vadd.f32 %v2630, %v2631
    %v2633 = vrot.slane %v2632, 1
    %v2634 = vadd.f32 %v2632, %v2633
    %v2635 = vmax.f32 %v2634, 1.0
    %v2636 = vrcp.pop %v2635
    %v2637 = vmul.f32 %v2613, %v2636
    %vm2638 = vcmask 0
    %2639 = vst.msk [vmem:[#allocation10] sm:$0x1] %vm2638, %v2637
    // Predicated region
    $region58: #{tpu_custom_call.1} parent=1 // pred_check
      _
    $region59: #{tpu_custom_call.1} parent=1 // pred_check_branch
      %2641 = sbr.rel (0) target = $region61
    $region60: #{tpu_custom_call.1} parent=1 // pred_region
      %s2643 = ssub.s32 16, 16
      %2644 = vsyncadd [#allocation4], %s2643
      %s2646 = sshll.u32 [#allocation10], 4
      %s2647 = int_to_ptr.vmem [resolvable:$true] %s2646
      %2649 = dma.vmem_to_hbm [thread:$0]  %s2647, 16, %s10, [#allocation4]
    $region61: #{tpu_custom_call.1} parent=1 // pred_fallthru
      _
    // Predicated region
    $region62: #{tpu_custom_call.1} parent=1 // pred_check
      _
    $region63: #{tpu_custom_call.1} parent=1 // pred_check_branch
      %2651 = sbr.rel (0) target = $region65
    $region64: #{tpu_custom_call.1} parent=1 // pred_region
      %2652 = dma.done [#allocation4], 16
    $region65: #{tpu_custom_call.1} parent=1 // pred_fallthru
      _
    %2653 = vsyncpa [#allocation3], 1
    %2654 = vsyncpa [#allocation6], 1
    %2655 = vsyncpa [#allocation9], 1
    %2656 = vsyncpa [#allocation4], 1

</llo_original>
